<compile_context>
chip_gen: v5e
topology: v5e:2x2
jax: 0.10.0
libtpu: 0.0.40
codegen_flags: <defaults>
</compile_context>

<pallas_src>
import functools

import numpy as np

import jax
import jax.numpy as jnp
from jax import lax
from jax.experimental import pallas as pl
from jax.experimental.pallas import tpu as pltpu

EPS = 1e-5
EXPANSION = 2
LANES = 128

# Set to 1 on v7x to single-buffer the grid-invariant weight operands
# (pl.Buffered(1)); left as None (default double-buffering) because the weights
# here are only a few MB and this keeps the kernel portable across versions.
_WEIGHT_BUFFER_COUNT = None


def _round_up(x, m):
    return (x + m - 1) // m * m


def _const_spec(shape):
    """BlockSpec for a grid-invariant operand (constant index map)."""
    index_map = lambda n: (0,) * len(shape)
    if _WEIGHT_BUFFER_COUNT is not None and hasattr(pl, "Buffered"):
        try:
            return pl.BlockSpec(shape, index_map,
                                pipeline_mode=pl.Buffered(_WEIGHT_BUFFER_COUNT))
        except Exception:  # older BlockSpec without pipeline_mode
            pass
    return pl.BlockSpec(shape, index_map)


# ---------------------------------------------------------------------------
# Fused kernel:  x-slab -> conv1+BN+ReLU -> grouped conv3x3+BN+ReLU ->
#                conv1x1+BN -> (+ residual) -> ReLU
# ---------------------------------------------------------------------------
def _fused_core(d_ref, m_ref, w1_ref, b1_ref, w2_ref, b2_ref, w3_ref, b3_ref,
                *, stride, Hd, Ho, Wo, CG):
    R, Wdp, Cin = d_ref.shape[1], d_ref.shape[2], d_ref.shape[3]
    C = w1_ref.shape[1]
    Cexp = w3_ref.shape[1]
    n_chunks = C // CG
    Mo = Ho * Wo
    s = stride

    x_slab = d_ref[0]                                          # [R, Wdp, Cin] bf16

    # ---- stage 1: 1x1 conv + BN + ReLU over the whole padded/decimated slab --
    h1 = jnp.dot(x_slab.reshape(R * Wdp, Cin), w1_ref[...],
                 preferred_element_type=jnp.float32)           # [R*Wdp, C] f32
    a1 = jnp.maximum(h1 + b1_ref[...], 0.0).reshape(R, Wdp, C)
    # conv2's zero padding: positions where x was padding must feed 0 (not
    # relu(b1)) into the 3x3 conv -> multiply by the precomputed interior mask.
    a1 = (a1 * m_ref[...]).astype(jnp.bfloat16)                # [R, Wdp, C] bf16

    # ---- stage 2+3: grouped 3x3 conv (per-tap accumulation, per 128/256-lane
    # block-diagonal chunk), BN+ReLU, then 1x1 expansion conv (BN folded). -----
    f = jnp.zeros((Mo, Cexp), jnp.float32) + b3_ref[...]
    for c in range(n_chunks):
        lo = c * CG
        h2 = jnp.zeros((Mo, CG), jnp.float32)
        for ky in range(3):
            py, oy = ky % s, ky // s
            for kx in range(3):
                px, ox = kx % s, kx // s
                row0 = (py * s + px) * Hd + oy
                tap = a1[row0:row0 + Ho, ox:ox + Wo, lo:lo + CG].reshape(Mo, CG)
                h2 = h2 + jnp.dot(tap, w2_ref[ky * 3 + kx, c],
                                  preferred_element_type=jnp.float32)
        a2 = jnp.maximum(h2 + b2_ref[:, lo:lo + CG], 0.0).astype(jnp.bfloat16)
        f = f + jnp.dot(a2, w3_ref[lo:lo + CG, :],
                        preferred_element_type=jnp.float32)
    return f, x_slab


def _fused_proj_kernel(d_ref, m_ref, w1_ref, b1_ref, w2_ref, b2_ref, w3_ref,
                       b3_ref, wr_ref, br_ref, o_ref,
                       *, stride, Hd, Ho, Wo, CG):
    f, x_slab = _fused_core(d_ref, m_ref, w1_ref, b1_ref, w2_ref, b2_ref,
                            w3_ref, b3_ref, stride=stride, Hd=Hd, Ho=Ho, Wo=Wo,
                            CG=CG)
    s = stride
    # residual reads x at the (oy*s, ox*s) positions == tap (1,1) of the slab
    py, oy = 1 % s, 1 // s
    px, ox = 1 % s, 1 // s
    row0 = (py * s + px) * Hd + oy
    Cin = x_slab.shape[-1]
    xc = x_slab[row0:row0 + Ho, ox:ox + Wo, :].reshape(Ho * Wo, Cin)
    r = jnp.dot(xc, wr_ref[...], preferred_element_type=jnp.float32) + br_ref[...]
    o_ref[0] = jnp.maximum(f + r, 0.0).astype(o_ref.dtype)


def _fused_ident_kernel(d_ref, m_ref, w1_ref, b1_ref, w2_ref, b2_ref, w3_ref,
                        b3_ref, o_ref, *, stride, Hd, Ho, Wo, CG):
    f, x_slab = _fused_core(d_ref, m_ref, w1_ref, b1_ref, w2_ref, b2_ref,
                            w3_ref, b3_ref, stride=stride, Hd=Hd, Ho=Ho, Wo=Wo,
                            CG=CG)
    # identity path implies stride == 1 and Cin == Cexp
    xc = x_slab[1:1 + Ho, 1:1 + Wo, :].reshape(Ho * Wo, x_slab.shape[-1])
    o_ref[0] = jnp.maximum(f + xc.astype(jnp.float32), 0.0).astype(o_ref.dtype)


# ---------------------------------------------------------------------------
# Wrapper
# ---------------------------------------------------------------------------
def _bn_fold(bn):
    gamma, beta, mean, var = bn
    scale = gamma / jnp.sqrt(var + EPS)
    shift = beta - mean * scale
    return scale.astype(jnp.float32), shift.astype(jnp.float32)


def _pad_last(a, target):
    pad = target - a.shape[-1]
    if pad == 0:
        return a
    return jnp.pad(a, [(0, 0)] * (a.ndim - 1) + [(0, pad)])


@functools.partial(jax.jit, static_argnums=(2, 3))
def bottleneck_resnext(x_nchw, params, stride, group):
    """[N, Fin, H, W] -> [N, 2*Fout, Ho, Wo]  (matches BottleNeck_ResNeXt, eval BN)."""
    N, Fin, H, W = x_nchw.shape
    Fout = params["w1"].shape[0]
    Fexp = params["w3"].shape[0]                   # EXPANSION * Fout
    width = Fout // group
    s = stride

    Cin = _round_up(Fin, LANES)
    C = _round_up(Fout, LANES)
    Cexp = _round_up(Fexp, LANES)
    Ho = (H - 1) // s + 1
    Wo = (W - 1) // s + 1
    Mo = Ho * Wo

    # Grouped-conv chunk width: largest of {256, 128} that keeps whole groups
    # inside a chunk (block-diagonal per chunk); else fall back to dense C.
    CG = C
    for cand in (256, 128):
        if cand < C and C % cand == 0 and cand % width == 0:
            CG = cand
            break
    n_chunks = C // CG

    # ---- fold BN scales into weights (host side, tiny) ---------------------
    s1, t1 = _bn_fold(params["bn1"])
    s2, t2 = _bn_fold(params["bn2"])
    s3, t3 = _bn_fold(params["bn3"])

    w1m = params["w1"][:, :, 0, 0].T * s1[None, :]                 # [Fin, Fout]
    w1m = _pad_last(jnp.pad(w1m, ((0, Cin - Fin), (0, 0))), C).astype(jnp.bfloat16)
    b1 = _pad_last(t1[None, :], C)

    w2 = params["w2"]                                              # [Fout, width, 3, 3]
    w2d = jnp.zeros((3, 3, Fout, Fout), jnp.float32)
    for g in range(group):                                          # block-diagonal fold
        blk = jnp.transpose(w2[g * width:(g + 1) * width], (2, 3, 1, 0))
        w2d = w2d.at[:, :, g * width:(g + 1) * width,
                     g * width:(g + 1) * width].set(blk)
    w2d = w2d * s2[None, None, None, :]
    w2d = jnp.pad(w2d, ((0, 0), (0, 0), (0, C - Fout), (0, C - Fout)))
    # [9, n_chunks, CG, CG]: only the diagonal chunk blocks (whole groups/chunk)
    w2c = jnp.stack(
        [jnp.stack([w2d[ky, kx, c * CG:(c + 1) * CG, c * CG:(c + 1) * CG]
                    for c in range(n_chunks)], axis=0)
         for ky in range(3) for kx in range(3)], axis=0).astype(jnp.bfloat16)
    b2 = _pad_last(t2[None, :], C)

    w3m = params["w3"][:, :, 0, 0].T * s3[None, :]                 # [Fout, Fexp]
    w3m = _pad_last(jnp.pad(w3m, ((0, C - Fout), (0, 0))), Cexp).astype(jnp.bfloat16)
    b3 = _pad_last(t3[None, :], Cexp)

    # ---- single layout pass over x: NHWC + channel pad + halo pad (+ phase
    # decimation for stride 2), bf16.  a1 never touches HBM. -------------------
    x = jnp.transpose(x_nchw, (0, 2, 3, 1))                        # NHWC f32
    xp = jnp.pad(x, ((0, 0), (1, 1), (1, 1), (0, Cin - Fin)))      # [N, H+2, W+2, Cin]
    if s == 1:
        Hd, Wd = H + 2, W + 2
        d = xp
    else:
        Hp, Wp = _round_up(H + 2, s), _round_up(W + 2, s)
        xp = jnp.pad(xp, ((0, 0), (0, Hp - (H + 2)), (0, Wp - (W + 2)), (0, 0)))
        Hd, Wd = Hp // s, Wp // s
        d = xp.reshape(N, Hd, s, Wd, s, Cin).transpose(0, 2, 4, 1, 3, 5)
        d = d.reshape(N, s * s * Hd, Wd, Cin)
    Wdp = _round_up(Wd, 8)                                         # sublane friendly
    if Wdp != Wd:
        d = jnp.pad(d, ((0, 0), (0, 0), (0, Wdp - Wd), (0, 0)))
    d = d.astype(jnp.bfloat16)
    R = d.shape[1]

    # interior mask (1 where the padded coordinate is a real image pixel)
    mask_np = np.zeros((R, Wdp, 1), np.float32)
    for p in range(s * s):
        py, px = p // s, p % s
        pr = np.arange(Hd) * s + py
        pc = np.arange(Wdp) * s + px
        m2 = ((pr >= 1) & (pr <= H))[:, None] & ((pc >= 1) & (pc <= W))[None, :]
        mask_np[p * Hd:(p + 1) * Hd, :, 0] = m2
    maskj = jnp.asarray(mask_np)

    kernel_kwargs = dict(stride=s, Hd=Hd, Ho=Ho, Wo=Wo, CG=CG)
    if "wr" in params:                                             # projection residual
        sr, tr = _bn_fold(params["bnr"])
        wrm = params["wr"][:, :, 0, 0].T * sr[None, :]             # [Fin, Fexp]
        wrm = _pad_last(jnp.pad(wrm, ((0, Cin - Fin), (0, 0))), Cexp).astype(jnp.bfloat16)
        br = _pad_last(tr[None, :], Cexp)
        kernel = functools.partial(_fused_proj_kernel, **kernel_kwargs)
        extra_args = (wrm, br)
        extra_specs = [_const_spec((Cin, Cexp)), _const_spec((1, Cexp))]
        res_flops = 2 * Mo * Cin * Cexp
        res_bytes = wrm.size * 2 + br.size * 4
    else:                                                          # identity residual
        kernel = functools.partial(_fused_ident_kernel, **kernel_kwargs)
        extra_args = ()
        extra_specs = []
        res_flops = 0
        res_bytes = 0

    flops = N * (2 * R * Wdp * Cin * C + 2 * 9 * Mo * CG * C
                 + 2 * Mo * C * Cexp + res_flops)
    bytes_accessed = (d.size * 2 + N * Mo * Cexp * 2 + maskj.size * 4
                      + (w1m.size + w2c.size + w3m.size) * 2
                      + (b1.size + b2.size + b3.size) * 4 + res_bytes)
    cost = pl.CostEstimate(flops=int(flops), transcendentals=0,
                           bytes_accessed=int(bytes_accessed))

    out = pl.pallas_call(
        kernel,
        out_shape=jax.ShapeDtypeStruct((N, Mo, Cexp), jnp.bfloat16),
        grid=(N,),
        in_specs=[
            pl.BlockSpec((1, R, Wdp, Cin), lambda n: (n, 0, 0, 0)),
            _const_spec((R, Wdp, 1)),
            _const_spec((Cin, C)),
            _const_spec((1, C)),
            _const_spec((9, n_chunks, CG, CG)),
            _const_spec((1, C)),
            _const_spec((C, Cexp)),
            _const_spec((1, Cexp)),
        ] + extra_specs,
        out_specs=pl.BlockSpec((1, Mo, Cexp), lambda n: (n, 0, 0)),
        compiler_params=pltpu.CompilerParams(
            dimension_semantics=("parallel",),
            vmem_limit_bytes=48 * 1024 * 1024),
        cost_estimate=cost,
    )(d, maskj, w1m, b1, w2c, b2, w3m, b3, *extra_args)

    out = out[:, :, :Fexp].reshape(N, Ho, Wo, Fexp)
    return jnp.transpose(out, (0, 3, 1, 2)).astype(jnp.float32)    # back to NCHW f32


# ---------------------------------------------------------------------------
# Deterministic parameter init (shapes from the module's __init__)
# ---------------------------------------------------------------------------
def _init_bn(key, c):
    k1, k2, k3, k4 = jax.random.split(key, 4)
    gamma = jax.random.uniform(k1, (c,), jnp.float32, 0.5, 1.5)
    beta = 0.1 * jax.random.normal(k2, (c,), jnp.float32)
    mean = 0.1 * jax.random.normal(k3, (c,), jnp.float32)
    var = jax.random.uniform(k4, (c,), jnp.float32, 0.5, 1.5)
    return (gamma, beta, mean, var)


def init_params(key, Fin, Fout, stride, group):
    assert Fout % group == 0
    width = Fout // group
    Fexp = EXPANSION * Fout
    ks = jax.random.split(key, 8)
    params = {
        "w1": 0.1 * jax.random.normal(ks[0], (Fout, Fin, 1, 1), jnp.float32),
        "bn1": _init_bn(ks[1], Fout),
        "w2": 0.1 * jax.random.normal(ks[2], (Fout, width, 3, 3), jnp.float32),
        "bn2": _init_bn(ks[3], Fout),
        "w3": 0.1 * jax.random.normal(ks[4], (Fexp, Fout, 1, 1), jnp.float32),
        "bn3": _init_bn(ks[5], Fexp),
    }
    if Fin != Fexp or stride != 1:
        params["wr"] = 0.1 * jax.random.normal(ks[6], (Fexp, Fin, 1, 1), jnp.float32)
        params["bnr"] = _init_bn(ks[7], Fexp)
    return params


# ---------------------------------------------------------------------------
# Pure-JAX reference (mirrors the PyTorch forward, eval-mode BN)
# ---------------------------------------------------------------------------
def ref_forward(x, params, stride, group):
    def bn(h, p):
        gamma, beta, mean, var = (a.reshape(1, -1, 1, 1) for a in p)
        return gamma * (h - mean) / jnp.sqrt(var + EPS) + beta

    def conv(h, w, s, pad, groups=1):
        return lax.conv_general_dilated(
            h, w, (s, s), ((pad, pad), (pad, pad)),
            dimension_numbers=("NCHW", "OIHW", "NCHW"),
            feature_group_count=groups)

    f = conv(x, params["w1"], 1, 0)
    f = jax.nn.relu(bn(f, params["bn1"]))
    f = conv(f, params["w2"], stride, 1, groups=group)
    f = jax.nn.relu(bn(f, params["bn2"]))
    f = conv(f, params["w3"], 1, 0)
    f = bn(f, params["bn3"])
    if "wr" in params:
        r = bn(conv(x, params["wr"], stride, 0), params["bnr"])
    else:
        r = x
    return jax.nn.relu(f + r)


# ---------------------------------------------------------------------------
if __name__ == "__main__":
    key = jax.random.PRNGKey(0)
    kx1, kp1, kx2, kp2 = jax.random.split(key, 4)

    # Tolerances are set for bf16 MXU operands / bf16 output (f32 accumulation)
    # vs the f32 reference.
    # Case 1: projection residual, stride 2, grouped 3x3 (cardinality 2)
    N, Fin, Fout, stride, group, H, W = 2, 16, 8, 2, 2, 16, 16
    x = jax.random.normal(kx1, (N, Fin, H, W), jnp.float32)
    params = init_params(kp1, Fin, Fout, stride, group)
    out = jax.block_until_ready(bottleneck_resnext(x, params, stride, group))
    ref = ref_forward(x, params, stride, group)
    assert out.shape == (N, EXPANSION * Fout, H // stride, W // stride)
    assert jnp.allclose(out, ref, atol=5e-2, rtol=5e-2), "projection-path mismatch"

    # Case 2: identity residual (Fin == 2*Fout, stride 1, group 1)
    N2, Fout2, stride2, group2, H2, W2 = 2, 8, 1, 1, 8, 8
    Fin2 = EXPANSION * Fout2
    x2 = jax.random.normal(kx2, (N2, Fin2, H2, W2), jnp.float32)
    params2 = init_params(kp2, Fin2, Fout2, stride2, group2)
    out2 = jax.block_until_ready(bottleneck_resnext(x2, params2, stride2, group2))
    ref2 = ref_forward(x2, params2, stride2, group2)
    assert out2.shape == (N2, Fin2, H2, W2)
    assert jnp.allclose(out2, ref2, atol=5e-2, rtol=5e-2), "identity-path mismatch"

    print("KERNEL_OK")
</pallas_src>

<mosaic_0001>
module attributes {stable_mosaic.version = 11 : i64} {
  func.func @_fused_proj_kernel(%arg0: i32, %arg1: memref<1x36x16x128xbf16, #tpu.memory_space<vmem>>, %arg2: memref<36x16x1xf32, #tpu.memory_space<vmem>>, %arg3: memref<128x128xbf16, #tpu.memory_space<vmem>>, %arg4: memref<1x128xf32, #tpu.memory_space<vmem>>, %arg5: memref<9x1x128x128xbf16, #tpu.memory_space<vmem>>, %arg6: memref<1x128xf32, #tpu.memory_space<vmem>>, %arg7: memref<128x128xbf16, #tpu.memory_space<vmem>>, %arg8: memref<1x128xf32, #tpu.memory_space<vmem>>, %arg9: memref<128x128xbf16, #tpu.memory_space<vmem>>, %arg10: memref<1x128xf32, #tpu.memory_space<vmem>>, %arg11: memref<1x64x128xbf16, #tpu.memory_space<vmem>>) attributes {dimension_semantics = [#tpu.dimension_semantics<parallel>], iteration_bounds = array<i64: 2>, scalar_prefetch = 0 : i64, scratch_operands = 0 : i64, tpu.core_type = #tpu.core_type<tc>, window_params = [{transform_indices = @transform_0, window_bounds = array<i64: 1, 36, 16, 128>}, {pipeline_mode = #tpu.pipeline_mode<synchronous>, transform_indices = @transform_1, window_bounds = array<i64: 36, 16, 1>}, {pipeline_mode = #tpu.pipeline_mode<synchronous>, transform_indices = @transform_2, window_bounds = array<i64: 128, 128>}, {pipeline_mode = #tpu.pipeline_mode<synchronous>, transform_indices = @transform_3, window_bounds = array<i64: 1, 128>}, {pipeline_mode = #tpu.pipeline_mode<synchronous>, transform_indices = @transform_4, window_bounds = array<i64: 9, 1, 128, 128>}, {pipeline_mode = #tpu.pipeline_mode<synchronous>, transform_indices = @transform_5, window_bounds = array<i64: 1, 128>}, {pipeline_mode = #tpu.pipeline_mode<synchronous>, transform_indices = @transform_6, window_bounds = array<i64: 128, 128>}, {pipeline_mode = #tpu.pipeline_mode<synchronous>, transform_indices = @transform_7, window_bounds = array<i64: 1, 128>}, {pipeline_mode = #tpu.pipeline_mode<synchronous>, transform_indices = @transform_8, window_bounds = array<i64: 128, 128>}, {pipeline_mode = #tpu.pipeline_mode<synchronous>, transform_indices = @transform_9, window_bounds = array<i64: 1, 128>}, {transform_indices = @transform_10, window_bounds = array<i64: 1, 64, 128>}]} {
    %c0 = arith.constant 0 : index
    %c0_0 = arith.constant 0 : index
    %c0_1 = arith.constant 0 : index
    %c0_2 = arith.constant 0 : index
    %0 = vector.load %arg1[%c0, %c0_0, %c0_1, %c0_2] : memref<1x36x16x128xbf16, #tpu.memory_space<vmem>>, vector<1x36x16x128xbf16>
    %1 = vector.shape_cast %0 : vector<1x36x16x128xbf16> to vector<36x16x128xbf16>
    %2 = vector.shape_cast %1 : vector<36x16x128xbf16> to vector<576x128xbf16>
    %c0_3 = arith.constant 0 : index
    %c0_4 = arith.constant 0 : index
    %3 = vector.load %arg3[%c0_3, %c0_4] : memref<128x128xbf16, #tpu.memory_space<vmem>>, vector<128x128xbf16>
    %cst = arith.constant dense<0.000000e+00> : vector<576x128xf32>
    %4 = tpu.matmul %2, %3, %cst {dimension_numbers = #tpu.dot_dimension_numbers<[1], [0], [0], [1], [0, 0, 1, 1], [], []>} : vector<576x128xbf16>, vector<128x128xbf16>, vector<576x128xf32> -> vector<576x128xf32>
    %c0_5 = arith.constant 0 : index
    %c0_6 = arith.constant 0 : index
    %5 = vector.load %arg4[%c0_5, %c0_6] : memref<1x128xf32, #tpu.memory_space<vmem>>, vector<1x128xf32>
    %6 = vector.broadcast %5 : vector<1x128xf32> to vector<576x128xf32>
    %7 = arith.addf %4, %6 : vector<576x128xf32>
    %cst_7 = arith.constant 0.000000e+00 : f32
    %8 = vector.broadcast %cst_7 : f32 to vector<576x128xf32>
    %9 = arith.maximumf %7, %8 : vector<576x128xf32>
    %10 = vector.shape_cast %9 : vector<576x128xf32> to vector<36x16x128xf32>
    %c0_8 = arith.constant 0 : index
    %c0_9 = arith.constant 0 : index
    %c0_10 = arith.constant 0 : index
    %11 = vector.load %arg2[%c0_8, %c0_9, %c0_10] : memref<36x16x1xf32, #tpu.memory_space<vmem>>, vector<36x16x1xf32>
    %12 = vector.broadcast %11 : vector<36x16x1xf32> to vector<36x16x128xf32>
    %13 = arith.mulf %10, %12 : vector<36x16x128xf32>
    %14 = arith.truncf %13 : vector<36x16x128xf32> to vector<36x16x128xbf16>
    %cst_11 = arith.constant 0.000000e+00 : f32
    %15 = vector.broadcast %cst_11 : f32 to vector<64x128xf32>
    %c0_12 = arith.constant 0 : index
    %c0_13 = arith.constant 0 : index
    %16 = vector.load %arg8[%c0_12, %c0_13] : memref<1x128xf32, #tpu.memory_space<vmem>>, vector<1x128xf32>
    %17 = vector.broadcast %16 : vector<1x128xf32> to vector<64x128xf32>
    %18 = arith.addf %15, %17 : vector<64x128xf32>
    %cst_14 = arith.constant 0.000000e+00 : f32
    %19 = vector.broadcast %cst_14 : f32 to vector<64x128xf32>
    %20 = vector.extract_strided_slice %14 {offsets = [0, 0, 0], sizes = [8, 8, 128], strides = [1, 1, 1]} : vector<36x16x128xbf16> to vector<8x8x128xbf16>
    %21 = vector.shape_cast %20 : vector<8x8x128xbf16> to vector<64x128xbf16>
    %c0_15 = arith.constant 0 : index
    %c0_16 = arith.constant 0 : index
    %c0_17 = arith.constant 0 : index
    %c0_18 = arith.constant 0 : index
    %22 = vector.load %arg5[%c0_15, %c0_16, %c0_17, %c0_18] : memref<9x1x128x128xbf16, #tpu.memory_space<vmem>>, vector<1x1x128x128xbf16>
    %23 = vector.shape_cast %22 : vector<1x1x128x128xbf16> to vector<128x128xbf16>
    %cst_19 = arith.constant dense<0.000000e+00> : vector<64x128xf32>
    %24 = tpu.matmul %21, %23, %cst_19 {dimension_numbers = #tpu.dot_dimension_numbers<[1], [0], [0], [1], [0, 0, 1, 1], [], []>} : vector<64x128xbf16>, vector<128x128xbf16>, vector<64x128xf32> -> vector<64x128xf32>
    %25 = arith.addf %19, %24 : vector<64x128xf32>
    %26 = vector.extract_strided_slice %14 {offsets = [9, 0, 0], sizes = [8, 8, 128], strides = [1, 1, 1]} : vector<36x16x128xbf16> to vector<8x8x128xbf16>
    %27 = vector.shape_cast %26 : vector<8x8x128xbf16> to vector<64x128xbf16>
    %c1 = arith.constant 1 : index
    %c0_20 = arith.constant 0 : index
    %c0_21 = arith.constant 0 : index
    %c0_22 = arith.constant 0 : index
    %28 = vector.load %arg5[%c1, %c0_20, %c0_21, %c0_22] : memref<9x1x128x128xbf16, #tpu.memory_space<vmem>>, vector<1x1x128x128xbf16>
    %29 = vector.shape_cast %28 : vector<1x1x128x128xbf16> to vector<128x128xbf16>
    %cst_23 = arith.constant dense<0.000000e+00> : vector<64x128xf32>
    %30 = tpu.matmul %27, %29, %cst_23 {dimension_numbers = #tpu.dot_dimension_numbers<[1], [0], [0], [1], [0, 0, 1, 1], [], []>} : vector<64x128xbf16>, vector<128x128xbf16>, vector<64x128xf32> -> vector<64x128xf32>
    %31 = arith.addf %25, %30 : vector<64x128xf32>
    %32 = vector.extract_strided_slice %14 {offsets = [0, 1, 0], sizes = [8, 8, 128], strides = [1, 1, 1]} : vector<36x16x128xbf16> to vector<8x8x128xbf16>
    %33 = vector.shape_cast %32 : vector<8x8x128xbf16> to vector<64x128xbf16>
    %c2 = arith.constant 2 : index
    %c0_24 = arith.constant 0 : index
    %c0_25 = arith.constant 0 : index
    %c0_26 = arith.constant 0 : index
    %34 = vector.load %arg5[%c2, %c0_24, %c0_25, %c0_26] : memref<9x1x128x128xbf16, #tpu.memory_space<vmem>>, vector<1x1x128x128xbf16>
    %35 = vector.shape_cast %34 : vector<1x1x128x128xbf16> to vector<128x128xbf16>
    %cst_27 = arith.constant dense<0.000000e+00> : vector<64x128xf32>
    %36 = tpu.matmul %33, %35, %cst_27 {dimension_numbers = #tpu.dot_dimension_numbers<[1], [0], [0], [1], [0, 0, 1, 1], [], []>} : vector<64x128xbf16>, vector<128x128xbf16>, vector<64x128xf32> -> vector<64x128xf32>
    %37 = arith.addf %31, %36 : vector<64x128xf32>
    %38 = vector.extract_strided_slice %14 {offsets = [18, 0, 0], sizes = [8, 8, 128], strides = [1, 1, 1]} : vector<36x16x128xbf16> to vector<8x8x128xbf16>
    %39 = vector.shape_cast %38 : vector<8x8x128xbf16> to vector<64x128xbf16>
    %c3 = arith.constant 3 : index
    %c0_28 = arith.constant 0 : index
    %c0_29 = arith.constant 0 : index
    %c0_30 = arith.constant 0 : index
    %40 = vector.load %arg5[%c3, %c0_28, %c0_29, %c0_30] : memref<9x1x128x128xbf16, #tpu.memory_space<vmem>>, vector<1x1x128x128xbf16>
    %41 = vector.shape_cast %40 : vector<1x1x128x128xbf16> to vector<128x128xbf16>
    %cst_31 = arith.constant dense<0.000000e+00> : vector<64x128xf32>
    %42 = tpu.matmul %39, %41, %cst_31 {dimension_numbers = #tpu.dot_dimension_numbers<[1], [0], [0], [1], [0, 0, 1, 1], [], []>} : vector<64x128xbf16>, vector<128x128xbf16>, vector<64x128xf32> -> vector<64x128xf32>
    %43 = arith.addf %37, %42 : vector<64x128xf32>
    %44 = vector.extract_strided_slice %14 {offsets = [27, 0, 0], sizes = [8, 8, 128], strides = [1, 1, 1]} : vector<36x16x128xbf16> to vector<8x8x128xbf16>
    %45 = vector.shape_cast %44 : vector<8x8x128xbf16> to vector<64x128xbf16>
    %c4 = arith.constant 4 : index
    %c0_32 = arith.constant 0 : index
    %c0_33 = arith.constant 0 : index
    %c0_34 = arith.constant 0 : index
    %46 = vector.load %arg5[%c4, %c0_32, %c0_33, %c0_34] : memref<9x1x128x128xbf16, #tpu.memory_space<vmem>>, vector<1x1x128x128xbf16>
    %47 = vector.shape_cast %46 : vector<1x1x128x128xbf16> to vector<128x128xbf16>
    %cst_35 = arith.constant dense<0.000000e+00> : vector<64x128xf32>
    %48 = tpu.matmul %45, %47, %cst_35 {dimension_numbers = #tpu.dot_dimension_numbers<[1], [0], [0], [1], [0, 0, 1, 1], [], []>} : vector<64x128xbf16>, vector<128x128xbf16>, vector<64x128xf32> -> vector<64x128xf32>
    %49 = arith.addf %43, %48 : vector<64x128xf32>
    %50 = vector.extract_strided_slice %14 {offsets = [18, 1, 0], sizes = [8, 8, 128], strides = [1, 1, 1]} : vector<36x16x128xbf16> to vector<8x8x128xbf16>
    %51 = vector.shape_cast %50 : vector<8x8x128xbf16> to vector<64x128xbf16>
    %c5 = arith.constant 5 : index
    %c0_36 = arith.constant 0 : index
    %c0_37 = arith.constant 0 : index
    %c0_38 = arith.constant 0 : index
    %52 = vector.load %arg5[%c5, %c0_36, %c0_37, %c0_38] : memref<9x1x128x128xbf16, #tpu.memory_space<vmem>>, vector<1x1x128x128xbf16>
    %53 = vector.shape_cast %52 : vector<1x1x128x128xbf16> to vector<128x128xbf16>
    %cst_39 = arith.constant dense<0.000000e+00> : vector<64x128xf32>
    %54 = tpu.matmul %51, %53, %cst_39 {dimension_numbers = #tpu.dot_dimension_numbers<[1], [0], [0], [1], [0, 0, 1, 1], [], []>} : vector<64x128xbf16>, vector<128x128xbf16>, vector<64x128xf32> -> vector<64x128xf32>
    %55 = arith.addf %49, %54 : vector<64x128xf32>
    %56 = vector.extract_strided_slice %14 {offsets = [1, 0, 0], sizes = [8, 8, 128], strides = [1, 1, 1]} : vector<36x16x128xbf16> to vector<8x8x128xbf16>
    %57 = vector.shape_cast %56 : vector<8x8x128xbf16> to vector<64x128xbf16>
    %c6 = arith.constant 6 : index
    %c0_40 = arith.constant 0 : index
    %c0_41 = arith.constant 0 : index
    %c0_42 = arith.constant 0 : index
    %58 = vector.load %arg5[%c6, %c0_40, %c0_41, %c0_42] : memref<9x1x128x128xbf16, #tpu.memory_space<vmem>>, vector<1x1x128x128xbf16>
    %59 = vector.shape_cast %58 : vector<1x1x128x128xbf16> to vector<128x128xbf16>
    %cst_43 = arith.constant dense<0.000000e+00> : vector<64x128xf32>
    %60 = tpu.matmul %57, %59, %cst_43 {dimension_numbers = #tpu.dot_dimension_numbers<[1], [0], [0], [1], [0, 0, 1, 1], [], []>} : vector<64x128xbf16>, vector<128x128xbf16>, vector<64x128xf32> -> vector<64x128xf32>
    %61 = arith.addf %55, %60 : vector<64x128xf32>
    %62 = vector.extract_strided_slice %14 {offsets = [10, 0, 0], sizes = [8, 8, 128], strides = [1, 1, 1]} : vector<36x16x128xbf16> to vector<8x8x128xbf16>
    %63 = vector.shape_cast %62 : vector<8x8x128xbf16> to vector<64x128xbf16>
    %c7 = arith.constant 7 : index
    %c0_44 = arith.constant 0 : index
    %c0_45 = arith.constant 0 : index
    %c0_46 = arith.constant 0 : index
    %64 = vector.load %arg5[%c7, %c0_44, %c0_45, %c0_46] : memref<9x1x128x128xbf16, #tpu.memory_space<vmem>>, vector<1x1x128x128xbf16>
    %65 = vector.shape_cast %64 : vector<1x1x128x128xbf16> to vector<128x128xbf16>
    %cst_47 = arith.constant dense<0.000000e+00> : vector<64x128xf32>
    %66 = tpu.matmul %63, %65, %cst_47 {dimension_numbers = #tpu.dot_dimension_numbers<[1], [0], [0], [1], [0, 0, 1, 1], [], []>} : vector<64x128xbf16>, vector<128x128xbf16>, vector<64x128xf32> -> vector<64x128xf32>
    %67 = arith.addf %61, %66 : vector<64x128xf32>
    %68 = vector.extract_strided_slice %14 {offsets = [1, 1, 0], sizes = [8, 8, 128], strides = [1, 1, 1]} : vector<36x16x128xbf16> to vector<8x8x128xbf16>
    %69 = vector.shape_cast %68 : vector<8x8x128xbf16> to vector<64x128xbf16>
    %c8 = arith.constant 8 : index
    %c0_48 = arith.constant 0 : index
    %c0_49 = arith.constant 0 : index
    %c0_50 = arith.constant 0 : index
    %70 = vector.load %arg5[%c8, %c0_48, %c0_49, %c0_50] : memref<9x1x128x128xbf16, #tpu.memory_space<vmem>>, vector<1x1x128x128xbf16>
    %71 = vector.shape_cast %70 : vector<1x1x128x128xbf16> to vector<128x128xbf16>
    %cst_51 = arith.constant dense<0.000000e+00> : vector<64x128xf32>
    %72 = tpu.matmul %69, %71, %cst_51 {dimension_numbers = #tpu.dot_dimension_numbers<[1], [0], [0], [1], [0, 0, 1, 1], [], []>} : vector<64x128xbf16>, vector<128x128xbf16>, vector<64x128xf32> -> vector<64x128xf32>
    %73 = arith.addf %67, %72 : vector<64x128xf32>
    %c0_52 = arith.constant 0 : index
    %c0_53 = arith.constant 0 : index
    %74 = vector.load %arg6[%c0_52, %c0_53] : memref<1x128xf32, #tpu.memory_space<vmem>>, vector<1x128xf32>
    %75 = vector.broadcast %74 : vector<1x128xf32> to vector<64x128xf32>
    %76 = arith.addf %73, %75 : vector<64x128xf32>
    %cst_54 = arith.constant 0.000000e+00 : f32
    %77 = vector.broadcast %cst_54 : f32 to vector<64x128xf32>
    %78 = arith.maximumf %76, %77 : vector<64x128xf32>
    %79 = arith.truncf %78 : vector<64x128xf32> to vector<64x128xbf16>
    %c0_55 = arith.constant 0 : index
    %c0_56 = arith.constant 0 : index
    %80 = vector.load %arg7[%c0_55, %c0_56] : memref<128x128xbf16, #tpu.memory_space<vmem>>, vector<128x128xbf16>
    %cst_57 = arith.constant dense<0.000000e+00> : vector<64x128xf32>
    %81 = tpu.matmul %79, %80, %cst_57 {dimension_numbers = #tpu.dot_dimension_numbers<[1], [0], [0], [1], [0, 0, 1, 1], [], []>} : vector<64x128xbf16>, vector<128x128xbf16>, vector<64x128xf32> -> vector<64x128xf32>
    %82 = arith.addf %18, %81 : vector<64x128xf32>
    %83 = vector.extract_strided_slice %1 {offsets = [27, 0, 0], sizes = [8, 8, 128], strides = [1, 1, 1]} : vector<36x16x128xbf16> to vector<8x8x128xbf16>
    %84 = vector.shape_cast %83 : vector<8x8x128xbf16> to vector<64x128xbf16>
    %c0_58 = arith.constant 0 : index
    %c0_59 = arith.constant 0 : index
    %85 = vector.load %arg9[%c0_58, %c0_59] : memref<128x128xbf16, #tpu.memory_space<vmem>>, vector<128x128xbf16>
    %cst_60 = arith.constant dense<0.000000e+00> : vector<64x128xf32>
    %86 = tpu.matmul %84, %85, %cst_60 {dimension_numbers = #tpu.dot_dimension_numbers<[1], [0], [0], [1], [0, 0, 1, 1], [], []>} : vector<64x128xbf16>, vector<128x128xbf16>, vector<64x128xf32> -> vector<64x128xf32>
    %c0_61 = arith.constant 0 : index
    %c0_62 = arith.constant 0 : index
    %87 = vector.load %arg10[%c0_61, %c0_62] : memref<1x128xf32, #tpu.memory_space<vmem>>, vector<1x128xf32>
    %88 = vector.broadcast %87 : vector<1x128xf32> to vector<64x128xf32>
    %89 = arith.addf %86, %88 : vector<64x128xf32>
    %90 = arith.addf %82, %89 : vector<64x128xf32>
    %cst_63 = arith.constant 0.000000e+00 : f32
    %91 = vector.broadcast %cst_63 : f32 to vector<64x128xf32>
    %92 = arith.maximumf %90, %91 : vector<64x128xf32>
    %93 = arith.truncf %92 : vector<64x128xf32> to vector<64x128xbf16>
    %c0_64 = arith.constant 0 : index
    %c0_65 = arith.constant 0 : index
    %c0_66 = arith.constant 0 : index
    %94 = vector.load %arg11[%c0_64, %c0_65, %c0_66] : memref<1x64x128xbf16, #tpu.memory_space<vmem>>, vector<1x64x128xbf16>
    %95 = vector.shape_cast %94 : vector<1x64x128xbf16> to vector<64x128xbf16>
    %96 = vector.shape_cast %93 : vector<64x128xbf16> to vector<1x64x128xbf16>
    tpu.vector_store %arg11[%c0_64, %c0_65, %c0_66], %96 {strides = array<i32>} : memref<1x64x128xbf16, #tpu.memory_space<vmem>>, vector<1x64x128xbf16>,
    return
  }
  func.func @transform_0(%arg0: i32) -> (i32, i32, i32, i32) {
    %c0_i32 = arith.constant 0 : i32
    %c0_i32_0 = arith.constant 0 : i32
    %c0_i32_1 = arith.constant 0 : i32
    %c0_i32_2 = arith.constant 0 : i32
    return %arg0, %c0_i32, %c0_i32_0, %c0_i32_1 : i32, i32, i32, i32
  }
  func.func @transform_1(%arg0: i32) -> (i32, i32, i32) {
    %c0_i32 = arith.constant 0 : i32
    %c0_i32_0 = arith.constant 0 : i32
    %c0_i32_1 = arith.constant 0 : i32
    %c0_i32_2 = arith.constant 0 : i32
    return %c0_i32, %c0_i32_0, %c0_i32_1 : i32, i32, i32
  }
  func.func @transform_2(%arg0: i32) -> (i32, i32) {
    %c0_i32 = arith.constant 0 : i32
    %c0_i32_0 = arith.constant 0 : i32
    %c0_i32_1 = arith.constant 0 : i32
    return %c0_i32, %c0_i32_0 : i32, i32
  }
  func.func @transform_3(%arg0: i32) -> (i32, i32) {
    %c0_i32 = arith.constant 0 : i32
    %c0_i32_0 = arith.constant 0 : i32
    %c0_i32_1 = arith.constant 0 : i32
    return %c0_i32, %c0_i32_0 : i32, i32
  }
  func.func @transform_4(%arg0: i32) -> (i32, i32, i32, i32) {
    %c0_i32 = arith.constant 0 : i32
    %c0_i32_0 = arith.constant 0 : i32
    %c0_i32_1 = arith.constant 0 : i32
    %c0_i32_2 = arith.constant 0 : i32
    %c0_i32_3 = arith.constant 0 : i32
    return %c0_i32, %c0_i32_0, %c0_i32_1, %c0_i32_2 : i32, i32, i32, i32
  }
  func.func @transform_5(%arg0: i32) -> (i32, i32) {
    %c0_i32 = arith.constant 0 : i32
    %c0_i32_0 = arith.constant 0 : i32
    %c0_i32_1 = arith.constant 0 : i32
    return %c0_i32, %c0_i32_0 : i32, i32
  }
  func.func @transform_6(%arg0: i32) -> (i32, i32) {
    %c0_i32 = arith.constant 0 : i32
    %c0_i32_0 = arith.constant 0 : i32
    %c0_i32_1 = arith.constant 0 : i32
    return %c0_i32, %c0_i32_0 : i32, i32
  }
  func.func @transform_7(%arg0: i32) -> (i32, i32) {
    %c0_i32 = arith.constant 0 : i32
    %c0_i32_0 = arith.constant 0 : i32
    %c0_i32_1 = arith.constant 0 : i32
    return %c0_i32, %c0_i32_0 : i32, i32
  }
  func.func @transform_8(%arg0: i32) -> (i32, i32) {
    %c0_i32 = arith.constant 0 : i32
    %c0_i32_0 = arith.constant 0 : i32
    %c0_i32_1 = arith.constant 0 : i32
    return %c0_i32, %c0_i32_0 : i32, i32
  }
  func.func @transform_9(%arg0: i32) -> (i32, i32) {
    %c0_i32 = arith.constant 0 : i32
    %c0_i32_0 = arith.constant 0 : i32
    %c0_i32_1 = arith.constant 0 : i32
    return %c0_i32, %c0_i32_0 : i32, i32
  }
  func.func @transform_10(%arg0: i32) -> (i32, i32, i32) {
    %c0_i32 = arith.constant 0 : i32
    %c0_i32_0 = arith.constant 0 : i32
    %c0_i32_1 = arith.constant 0 : i32
    return %arg0, %c0_i32, %c0_i32_0 : i32, i32, i32
  }
}

</mosaic_0001>

<llo_original>
// kernel: bottleneck_resnext.1
$region0: #{bottleneck_resnext.1}
  #allocation0 [shape = 'u32[]', space=smem, size = 0x4, offset = 0x4, fixed_abs, tag = 'smem constant byte address 0x4 - core index']
  #allocation1 [shape = 'u32[72,128]{1,0:T(1,128)}', space=vmem, size = 0x9000, scoped, tag = 'internal scratch']
  %s0 = inlined_call_operand.vmem [shape: bf16[2,36,16,128], index: 0, kind: input, shape index: {}]
  %s1 = inlined_call_operand.vmem [shape: f32[36,16,1], index: 1, kind: input, shape index: {}]
  %s2 = inlined_call_operand.vmem [shape: bf16[128,128], index: 2, kind: input, shape index: {}]
  %s3 = inlined_call_operand.vmem [shape: f32[1,128], index: 3, kind: input, shape index: {}]
  %s4 = inlined_call_operand.vmem [shape: bf16[9,1,128,128], index: 4, kind: input, shape index: {}]
  %s5 = inlined_call_operand.vmem [shape: f32[1,128], index: 5, kind: input, shape index: {}]
  %s6 = inlined_call_operand.vmem [shape: bf16[128,128], index: 6, kind: input, shape index: {}]
  %s7 = inlined_call_operand.vmem [shape: f32[1,128], index: 7, kind: input, shape index: {}]
  %s8 = inlined_call_operand.vmem [shape: bf16[128,128], index: 8, kind: input, shape index: {}]
  %s9 = inlined_call_operand.vmem [shape: f32[1,128], index: 9, kind: input, shape index: {}]
  %s10 = inlined_call_operand.vmem [shape: bf16[2,64,128], index: 10, kind: output, shape index: {}]
  %s11 = sld [smem:[#allocation0]]
  $region73: #{bottleneck_resnext.1} parent=0
    _
  %s13 = ssub.s32 1, %s11
  %s14 = scalar_select 0, %s13, %s11
  loop: start=0, step=1, limit=4
  $region2: #{bottleneck_resnext.1} parent=0 // loop_pre_header
    _
  $region3: #{bottleneck_resnext.1} parent=0 // loop_header
    %s16 = sphi 0, %s20
    %p17 = scmp.ge.s32.totalorder %s16, 4
    %s26 = sphi 0, %s28
    %s29 = sphi 0, %s26
    %s30 = sphi 0, %s29
    %s46 = sphi 0, %s30
    %s50 = sphi 0, %s50
    %s52 = sphi 0, %s50
    %s53 = sphi 0, %s52
    %s67 = sphi 0, %s53
    %s71 = sphi 0, %s71
    %s73 = sphi 0, %s71
    %s74 = sphi 0, %s73
    %s88 = sphi 0, %s74
    %s92 = sphi 0, %s92
    %s94 = sphi 0, %s92
    %s95 = sphi 0, %s94
    %s109 = sphi 0, %s95
    %s113 = sphi 0, %s113
    %s115 = sphi 0, %s113
    %s116 = sphi 0, %s115
    %s130 = sphi 0, %s116
    %s134 = sphi 0, %s134
    %s136 = sphi 0, %s134
    %s137 = sphi 0, %s136
    %s151 = sphi 0, %s137
    %s155 = sphi 0, %s155
    %s157 = sphi 0, %s155
    %s158 = sphi 0, %s157
    %s172 = sphi 0, %s158
    %s176 = sphi 0, %s176
    %s178 = sphi 0, %s176
    %s179 = sphi 0, %s178
    %s193 = sphi 0, %s179
    %s197 = sphi 0, %s197
    %s199 = sphi 0, %s197
    %s200 = sphi 0, %s199
    %s214 = sphi 0, %s200
    %s218 = sphi 0, %s218
    %s220 = sphi 0, %s218
    %s221 = sphi 0, %s220
    %s235 = sphi 0, %s221
    %s241 = sphi 0, %s243
    %s244 = sphi 0, %s241
    %s245 = sphi 0, %s244
    %s261 = sphi 0, %s245
  $region4: #{bottleneck_resnext.1} parent=0 // loop_header_branch
    %19 = sbr.rel (%p17) target = $region8
  $region5: #{bottleneck_resnext.1} parent=0 // loop_body
    %s21 = ssub.s32 %s16, 1
    %s22 = ssub.s32 %s16, 2
    %s23 = sadd.s32 %s16, 1
    %s24 = ssub.s32 %s16, %s23
    %p25 = scmp.eq.s32.totalorder %s24, 0
    %s27 = sadd.s32 %s26, 1
    %s28 = scalar_select %p25, %s26, %s27
    %p31 = pneg %p25
    %p32 = scmp.eq.s32.totalorder %s16, 1
    %p33 = por %p31, %p32
    %p34 = scmp.ne.s32.totalorder %s26, %s29
    %p35 = scmp.eq.s32.totalorder %s16, 0
    %p36 = por %p34, %p35
    %p37 = scmp.ne.s32.totalorder %s26, %s29
    %p38 = scmp.eq.s32.totalorder %s21, 1
    %p39 = por %p37, %p38
    %p40 = scmp.ne.s32.totalorder %s29, %s30
    %p41 = scmp.eq.s32.totalorder %s21, 0
    %p42 = por %p40, %p41
    %p43 = scmp.ne.s32.totalorder %s29, %s30
    %p44 = scmp.eq.s32.totalorder %s22, 1
    %p45 = por %p43, %p44
    %p47 = scmp.ne.s32.totalorder %s30, %s46
    %p48 = scmp.eq.s32.totalorder %s22, 0
    %p49 = por %p47, %p48
    %s51 = sadd.s32 %s50, 1
    %p54 = scmp.eq.s32.totalorder %s16, 1
    %p55 = scmp.ne.s32.totalorder %s50, %s52
    %p56 = scmp.eq.s32.totalorder %s16, 0
    %p57 = por %p55, %p56
    %p58 = scmp.ne.s32.totalorder %s50, %s52
    %p59 = scmp.eq.s32.totalorder %s21, 1
    %p60 = por %p58, %p59
    %p61 = scmp.ne.s32.totalorder %s52, %s53
    %p62 = scmp.eq.s32.totalorder %s21, 0
    %p63 = por %p61, %p62
    %p64 = scmp.ne.s32.totalorder %s52, %s53
    %p65 = scmp.eq.s32.totalorder %s22, 1
    %p66 = por %p64, %p65
    %p68 = scmp.ne.s32.totalorder %s53, %s67
    %p69 = scmp.eq.s32.totalorder %s22, 0
    %p70 = por %p68, %p69
    %s72 = sadd.s32 %s71, 1
    %p75 = scmp.eq.s32.totalorder %s16, 1
    %p76 = scmp.ne.s32.totalorder %s71, %s73
    %p77 = scmp.eq.s32.totalorder %s16, 0
    %p78 = por %p76, %p77
    %p79 = scmp.ne.s32.totalorder %s71, %s73
    %p80 = scmp.eq.s32.totalorder %s21, 1
    %p81 = por %p79, %p80
    %p82 = scmp.ne.s32.totalorder %s73, %s74
    %p83 = scmp.eq.s32.totalorder %s21, 0
    %p84 = por %p82, %p83
    %p85 = scmp.ne.s32.totalorder %s73, %s74
    %p86 = scmp.eq.s32.totalorder %s22, 1
    %p87 = por %p85, %p86
    %p89 = scmp.ne.s32.totalorder %s74, %s88
    %p90 = scmp.eq.s32.totalorder %s22, 0
    %p91 = por %p89, %p90
    %s93 = sadd.s32 %s92, 1
    %p96 = scmp.eq.s32.totalorder %s16, 1
    %p97 = scmp.ne.s32.totalorder %s92, %s94
    %p98 = scmp.eq.s32.totalorder %s16, 0
    %p99 = por %p97, %p98
    %p100 = scmp.ne.s32.totalorder %s92, %s94
    %p101 = scmp.eq.s32.totalorder %s21, 1
    %p102 = por %p100, %p101
    %p103 = scmp.ne.s32.totalorder %s94, %s95
    %p104 = scmp.eq.s32.totalorder %s21, 0
    %p105 = por %p103, %p104
    %p106 = scmp.ne.s32.totalorder %s94, %s95
    %p107 = scmp.eq.s32.totalorder %s22, 1
    %p108 = por %p106, %p107
    %p110 = scmp.ne.s32.totalorder %s95, %s109
    %p111 = scmp.eq.s32.totalorder %s22, 0
    %p112 = por %p110, %p111
    %s114 = sadd.s32 %s113, 1
    %p117 = scmp.eq.s32.totalorder %s16, 1
    %p118 = scmp.ne.s32.totalorder %s113, %s115
    %p119 = scmp.eq.s32.totalorder %s16, 0
    %p120 = por %p118, %p119
    %p121 = scmp.ne.s32.totalorder %s113, %s115
    %p122 = scmp.eq.s32.totalorder %s21, 1
    %p123 = por %p121, %p122
    %p124 = scmp.ne.s32.totalorder %s115, %s116
    %p125 = scmp.eq.s32.totalorder %s21, 0
    %p126 = por %p124, %p125
    %p127 = scmp.ne.s32.totalorder %s115, %s116
    %p128 = scmp.eq.s32.totalorder %s22, 1
    %p129 = por %p127, %p128
    %p131 = scmp.ne.s32.totalorder %s116, %s130
    %p132 = scmp.eq.s32.totalorder %s22, 0
    %p133 = por %p131, %p132
    %s135 = sadd.s32 %s134, 1
    %p138 = scmp.eq.s32.totalorder %s16, 1
    %p139 = scmp.ne.s32.totalorder %s134, %s136
    %p140 = scmp.eq.s32.totalorder %s16, 0
    %p141 = por %p139, %p140
    %p142 = scmp.ne.s32.totalorder %s134, %s136
    %p143 = scmp.eq.s32.totalorder %s21, 1
    %p144 = por %p142, %p143
    %p145 = scmp.ne.s32.totalorder %s136, %s137
    %p146 = scmp.eq.s32.totalorder %s21, 0
    %p147 = por %p145, %p146
    %p148 = scmp.ne.s32.totalorder %s136, %s137
    %p149 = scmp.eq.s32.totalorder %s22, 1
    %p150 = por %p148, %p149
    %p152 = scmp.ne.s32.totalorder %s137, %s151
    %p153 = scmp.eq.s32.totalorder %s22, 0
    %p154 = por %p152, %p153
    %s156 = sadd.s32 %s155, 1
    %p159 = scmp.eq.s32.totalorder %s16, 1
    %p160 = scmp.ne.s32.totalorder %s155, %s157
    %p161 = scmp.eq.s32.totalorder %s16, 0
    %p162 = por %p160, %p161
    %p163 = scmp.ne.s32.totalorder %s155, %s157
    %p164 = scmp.eq.s32.totalorder %s21, 1
    %p165 = por %p163, %p164
    %p166 = scmp.ne.s32.totalorder %s157, %s158
    %p167 = scmp.eq.s32.totalorder %s21, 0
    %p168 = por %p166, %p167
    %p169 = scmp.ne.s32.totalorder %s157, %s158
    %p170 = scmp.eq.s32.totalorder %s22, 1
    %p171 = por %p169, %p170
    %p173 = scmp.ne.s32.totalorder %s158, %s172
    %p174 = scmp.eq.s32.totalorder %s22, 0
    %p175 = por %p173, %p174
    %s177 = sadd.s32 %s176, 1
    %p180 = scmp.eq.s32.totalorder %s16, 1
    %p181 = scmp.ne.s32.totalorder %s176, %s178
    %p182 = scmp.eq.s32.totalorder %s16, 0
    %p183 = por %p181, %p182
    %p184 = scmp.ne.s32.totalorder %s176, %s178
    %p185 = scmp.eq.s32.totalorder %s21, 1
    %p186 = por %p184, %p185
    %p187 = scmp.ne.s32.totalorder %s178, %s179
    %p188 = scmp.eq.s32.totalorder %s21, 0
    %p189 = por %p187, %p188
    %p190 = scmp.ne.s32.totalorder %s178, %s179
    %p191 = scmp.eq.s32.totalorder %s22, 1
    %p192 = por %p190, %p191
    %p194 = scmp.ne.s32.totalorder %s179, %s193
    %p195 = scmp.eq.s32.totalorder %s22, 0
    %p196 = por %p194, %p195
    %s198 = sadd.s32 %s197, 1
    %p201 = scmp.eq.s32.totalorder %s16, 1
    %p202 = scmp.ne.s32.totalorder %s197, %s199
    %p203 = scmp.eq.s32.totalorder %s16, 0
    %p204 = por %p202, %p203
    %p205 = scmp.ne.s32.totalorder %s197, %s199
    %p206 = scmp.eq.s32.totalorder %s21, 1
    %p207 = por %p205, %p206
    %p208 = scmp.ne.s32.totalorder %s199, %s200
    %p209 = scmp.eq.s32.totalorder %s21, 0
    %p210 = por %p208, %p209
    %p211 = scmp.ne.s32.totalorder %s199, %s200
    %p212 = scmp.eq.s32.totalorder %s22, 1
    %p213 = por %p211, %p212
    %p215 = scmp.ne.s32.totalorder %s200, %s214
    %p216 = scmp.eq.s32.totalorder %s22, 0
    %p217 = por %p215, %p216
    %s219 = sadd.s32 %s218, 1
    %p222 = scmp.eq.s32.totalorder %s16, 1
    %p223 = scmp.ne.s32.totalorder %s218, %s220
    %p224 = scmp.eq.s32.totalorder %s16, 0
    %p225 = por %p223, %p224
    %p226 = scmp.ne.s32.totalorder %s218, %s220
    %p227 = scmp.eq.s32.totalorder %s21, 1
    %p228 = por %p226, %p227
    %p229 = scmp.ne.s32.totalorder %s220, %s221
    %p230 = scmp.eq.s32.totalorder %s21, 0
    %p231 = por %p229, %p230
    %p232 = scmp.ne.s32.totalorder %s220, %s221
    %p233 = scmp.eq.s32.totalorder %s22, 1
    %p234 = por %p232, %p233
    %p236 = scmp.ne.s32.totalorder %s221, %s235
    %p237 = scmp.eq.s32.totalorder %s22, 0
    %p238 = por %p236, %p237
    %s239 = ssub.s32 %s16, %s23
    %p240 = scmp.eq.s32.totalorder %s239, 0
    %s242 = sadd.s32 %s241, 1
    %s243 = scalar_select %p240, %s241, %s242
    %p246 = pneg %p240
    %p247 = scmp.eq.s32.totalorder %s16, 1
    %p248 = por %p246, %p247
    %p249 = scmp.ne.s32.totalorder %s241, %s244
    %p250 = scmp.eq.s32.totalorder %s16, 0
    %p251 = por %p249, %p250
    %p252 = scmp.ne.s32.totalorder %s241, %s244
    %p253 = scmp.eq.s32.totalorder %s21, 1
    %p254 = por %p252, %p253
    %p255 = scmp.ne.s32.totalorder %s244, %s245
    %p256 = scmp.eq.s32.totalorder %s21, 0
    %p257 = por %p255, %p256
    %p258 = scmp.ne.s32.totalorder %s244, %s245
    %p259 = scmp.eq.s32.totalorder %s22, 1
    %p260 = por %p258, %p259
    %p262 = scmp.ne.s32.totalorder %s245, %s261
    %p263 = scmp.eq.s32.totalorder %s22, 0
    %p264 = por %p262, %p263
    %p265 = scmp.le.s32.totalorder 1, %s16
    %p266 = scmp.lt.s32.totalorder %s16, 3
    %p267 = pnand %p265, %p266
    %p268 = pneg %p267
    // Predicated region
    $region9: #{bottleneck_resnext.1} parent=5 // pred_check
      _
    $region10: #{bottleneck_resnext.1} parent=5 // pred_check_branch
      %270 = sbr.rel (%p267) target = $region12
    $region11: #{bottleneck_resnext.1} parent=5 // pred_region
      %s271 = ssub.s32 %s16, 1
      // Predicated region
      $region13: #{bottleneck_resnext.1} parent=11 // pred_check
        %p272 = pneg %p63
      $region14: #{bottleneck_resnext.1} parent=11 // pred_check_branch
        %274 = sbr.rel (%p272) target = $region16
      $region15: #{bottleneck_resnext.1} parent=11 // pred_region
        _
      $region16: #{bottleneck_resnext.1} parent=11 // pred_fallthru
        _
      // Predicated region
      $region17: #{bottleneck_resnext.1} parent=11 // pred_check
        %p275 = pneg %p84
      $region18: #{bottleneck_resnext.1} parent=11 // pred_check_branch
        %277 = sbr.rel (%p275) target = $region20
      $region19: #{bottleneck_resnext.1} parent=11 // pred_region
        _
      $region20: #{bottleneck_resnext.1} parent=11 // pred_fallthru
        _
      // Predicated region
      $region21: #{bottleneck_resnext.1} parent=11 // pred_check
        %p278 = pneg %p105
      $region22: #{bottleneck_resnext.1} parent=11 // pred_check_branch
        %280 = sbr.rel (%p278) target = $region24
      $region23: #{bottleneck_resnext.1} parent=11 // pred_region
        _
      $region24: #{bottleneck_resnext.1} parent=11 // pred_fallthru
        _
      // Predicated region
      $region25: #{bottleneck_resnext.1} parent=11 // pred_check
        %p281 = pneg %p126
      $region26: #{bottleneck_resnext.1} parent=11 // pred_check_branch
        %283 = sbr.rel (%p281) target = $region28
      $region27: #{bottleneck_resnext.1} parent=11 // pred_region
        _
      $region28: #{bottleneck_resnext.1} parent=11 // pred_fallthru
        _
      // Predicated region
      $region29: #{bottleneck_resnext.1} parent=11 // pred_check
        %p284 = pneg %p147
      $region30: #{bottleneck_resnext.1} parent=11 // pred_check_branch
        %286 = sbr.rel (%p284) target = $region32
      $region31: #{bottleneck_resnext.1} parent=11 // pred_region
        _
      $region32: #{bottleneck_resnext.1} parent=11 // pred_fallthru
        _
      // Predicated region
      $region33: #{bottleneck_resnext.1} parent=11 // pred_check
        %p287 = pneg %p168
      $region34: #{bottleneck_resnext.1} parent=11 // pred_check_branch
        %289 = sbr.rel (%p287) target = $region36
      $region35: #{bottleneck_resnext.1} parent=11 // pred_region
        _
      $region36: #{bottleneck_resnext.1} parent=11 // pred_fallthru
        _
      // Predicated region
      $region37: #{bottleneck_resnext.1} parent=11 // pred_check
        %p290 = pneg %p189
      $region38: #{bottleneck_resnext.1} parent=11 // pred_check_branch
        %292 = sbr.rel (%p290) target = $region40
      $region39: #{bottleneck_resnext.1} parent=11 // pred_region
        _
      $region40: #{bottleneck_resnext.1} parent=11 // pred_fallthru
        _
      // Predicated region
      $region41: #{bottleneck_resnext.1} parent=11 // pred_check
        %p293 = pneg %p210
      $region42: #{bottleneck_resnext.1} parent=11 // pred_check_branch
        %295 = sbr.rel (%p293) target = $region44
      $region43: #{bottleneck_resnext.1} parent=11 // pred_region
        _
      $region44: #{bottleneck_resnext.1} parent=11 // pred_fallthru
        _
      // Predicated region
      $region45: #{bottleneck_resnext.1} parent=11 // pred_check
        %p296 = pneg %p231
      $region46: #{bottleneck_resnext.1} parent=11 // pred_check_branch
        %298 = sbr.rel (%p296) target = $region48
      $region47: #{bottleneck_resnext.1} parent=11 // pred_region
        _
      $region48: #{bottleneck_resnext.1} parent=11 // pred_fallthru
        _
    $region12: #{bottleneck_resnext.1} parent=5 // pred_fallthru
      _
    %p299 = scmp.lt.s32.totalorder %s16, 2
    // Predicated region
    $region49: #{bottleneck_resnext.1} parent=5 // pred_check
      %p300 = pneg %p299
    $region50: #{bottleneck_resnext.1} parent=5 // pred_check_branch
      %302 = sbr.rel (%p300) target = $region52
    $region51: #{bottleneck_resnext.1} parent=5 // pred_region
      // Predicated region
      $region53: #{bottleneck_resnext.1} parent=51 // pred_check
        %p303 = pneg %p36
      $region54: #{bottleneck_resnext.1} parent=51 // pred_check_branch
        %305 = sbr.rel (%p303) target = $region56
      $region55: #{bottleneck_resnext.1} parent=51 // pred_region
        %p306 = scmp.lt.s32.totalorder %s16, 1
        %s307 = scalar_select %p306, %s16, 1
        %s308 = smul.addr %s307, 72
        %s309 = smul.addr %s308, 4
        %s310 = scalar_lea.vmem %s0, %s309
      $region56: #{bottleneck_resnext.1} parent=51 // pred_fallthru
        _
    $region52: #{bottleneck_resnext.1} parent=5 // pred_fallthru
      _
    %p311 = scmp.le.s32.totalorder 1, %s16
    %p312 = scmp.lt.s32.totalorder %s16, 3
    %p313 = pnand %p311, %p312
    %p314 = pneg %p313
    // Predicated region
    $region57: #{bottleneck_resnext.1} parent=5 // pred_check
      _
    $region58: #{bottleneck_resnext.1} parent=5 // pred_check_branch
      %316 = sbr.rel (%p313) target = $region60
    $region59: #{bottleneck_resnext.1} parent=5 // pred_region
      %s317 = ssub.s32 %s16, 1
      %p318 = scmp.lt.s32.totalorder %s21, 1
      %s319 = scalar_select %p318, %s21, 1
      %s320 = smul.addr %s319, 72
      %s321 = smul.addr %s320, 4
      %s322 = scalar_lea.vmem %s0, %s321
      %p323 = pneg %p42
      %p324 = pneg %p39
      %p325 = pneg %p63
      %p326 = pneg %p60
      %p327 = pneg %p84
      %p328 = pneg %p81
      %p329 = pneg %p105
      %p330 = pneg %p102
      %p331 = pneg %p126
      %p332 = pneg %p123
      %p333 = pneg %p147
      %p334 = pneg %p144
      %p335 = pneg %p168
      %p336 = pneg %p165
      %p337 = pneg %p189
      %p338 = pneg %p186
      %p339 = pneg %p210
      %p340 = pneg %p207
      %p341 = pneg %p231
      %p342 = pneg %p228
      %p343 = pneg %p257
      %p344 = pneg %p254
      %p345 = scmp.lt.s32.totalorder %s21, 1
      %s346 = scalar_select %p345, %s21, 1
      %s347 = smul.addr %s346, 8
      %s348 = smul.addr %s347, 4
      %s349 = scalar_lea.vmem %s10, %s348
      %p350 = scmp.lt.s32.totalorder %s21, 1
      %s351 = scalar_select %p350, %s21, 1
      %s352 = smul.addr %s351, 72
      %s353 = smul.addr %s352, 4
      %s354 = scalar_lea.vmem %s0, %s353
      %p355 = scmp.lt.s32.totalorder %s21, 1
      %s356 = scalar_select %p355, %s21, 1
      %s357 = smul.addr %s356, 8
      %s358 = smul.addr %s357, 4
      %s359 = scalar_lea.vmem %s10, %s358
      %v360 = vld [vmem:[%s354] sm:$0xf]
      %v361 = vld [vmem:[%s354 + $0x4] sm:$0xf]
      %v362 = vld [vmem:[%s354 + $0x8] sm:$0xf]
      %v363 = vld [vmem:[%s354 + $0xc] sm:$0xf]
      %v364 = vld [vmem:[%s354 + $0x10] sm:$0xf]
      %v365 = vld [vmem:[%s354 + $0x14] sm:$0xf]
      %v366 = vld [vmem:[%s354 + $0x18] sm:$0xf]
      %v367 = vld [vmem:[%s354 + $0x1c] sm:$0xf]
      %v368 = vld [vmem:[%s354 + $0x20] sm:$0xf]
      %v369 = vld [vmem:[%s354 + $0x24] sm:$0xf]
      %v370 = vld [vmem:[%s354 + $0x28] sm:$0xf]
      %v371 = vld [vmem:[%s354 + $0x2c] sm:$0xf]
      %v372 = vld [vmem:[%s354 + $0x30] sm:$0xf]
      %v373 = vld [vmem:[%s354 + $0x34] sm:$0xf]
      %v374 = vld [vmem:[%s354 + $0x38] sm:$0xf]
      %v375 = vld [vmem:[%s354 + $0x3c] sm:$0xf]
      %v376 = vld [vmem:[%s354 + $0x40] sm:$0xf]
      %v377 = vld [vmem:[%s354 + $0x44] sm:$0xf]
      %v378 = vld [vmem:[%s354 + $0x48] sm:$0xf]
      %v379 = vld [vmem:[%s354 + $0x4c] sm:$0xf]
      %v380 = vld [vmem:[%s354 + $0x50] sm:$0xf]
      %v381 = vld [vmem:[%s354 + $0x54] sm:$0xf]
      %v382 = vld [vmem:[%s354 + $0x58] sm:$0xf]
      %v383 = vld [vmem:[%s354 + $0x5c] sm:$0xf]
      %v384 = vld [vmem:[%s354 + $0x60] sm:$0xf]
      %v385 = vld [vmem:[%s354 + $0x64] sm:$0xf]
      %v386 = vld [vmem:[%s354 + $0x68] sm:$0xf]
      %v387 = vld [vmem:[%s354 + $0x6c] sm:$0xf]
      %v388 = vld [vmem:[%s354 + $0x70] sm:$0xf]
      %v389 = vld [vmem:[%s354 + $0x74] sm:$0xf]
      %v390 = vld [vmem:[%s354 + $0x78] sm:$0xf]
      %v391 = vld [vmem:[%s354 + $0x7c] sm:$0xf]
      %v392 = vld [vmem:[%s354 + $0x80] sm:$0xf]
      %v393 = vld [vmem:[%s354 + $0x84] sm:$0xf]
      %v394 = vld [vmem:[%s354 + $0x88] sm:$0xf]
      %v395 = vld [vmem:[%s354 + $0x8c] sm:$0xf]
      %v396 = vld [vmem:[%s354 + $0x90] sm:$0xf]
      %v397 = vld [vmem:[%s354 + $0x94] sm:$0xf]
      %v398 = vld [vmem:[%s354 + $0x98] sm:$0xf]
      %v399 = vld [vmem:[%s354 + $0x9c] sm:$0xf]
      %v400 = vld [vmem:[%s354 + $0xa0] sm:$0xf]
      %v401 = vld [vmem:[%s354 + $0xa4] sm:$0xf]
      %v402 = vld [vmem:[%s354 + $0xa8] sm:$0xf]
      %v403 = vld [vmem:[%s354 + $0xac] sm:$0xf]
      %v404 = vld [vmem:[%s354 + $0xb0] sm:$0xf]
      %v405 = vld [vmem:[%s354 + $0xb4] sm:$0xf]
      %v406 = vld [vmem:[%s354 + $0xb8] sm:$0xf]
      %v407 = vld [vmem:[%s354 + $0xbc] sm:$0xf]
      %v408 = vld [vmem:[%s354 + $0xc0] sm:$0xf]
      %v409 = vld [vmem:[%s354 + $0xc4] sm:$0xf]
      %v410 = vld [vmem:[%s354 + $0xc8] sm:$0xf]
      %v411 = vld [vmem:[%s354 + $0xcc] sm:$0xf]
      %v412 = vld [vmem:[%s354 + $0xd0] sm:$0xf]
      %v413 = vld [vmem:[%s354 + $0xd4] sm:$0xf]
      %v414 = vld [vmem:[%s354 + $0xd8] sm:$0xf]
      %v415 = vld [vmem:[%s354 + $0xdc] sm:$0xf]
      %v416 = vld [vmem:[%s354 + $0xe0] sm:$0xf]
      %v417 = vld [vmem:[%s354 + $0xe4] sm:$0xf]
      %v418 = vld [vmem:[%s354 + $0xe8] sm:$0xf]
      %v419 = vld [vmem:[%s354 + $0xec] sm:$0xf]
      %v420 = vld [vmem:[%s354 + $0xf0] sm:$0xf]
      %v421 = vld [vmem:[%s354 + $0xf4] sm:$0xf]
      %v422 = vld [vmem:[%s354 + $0xf8] sm:$0xf]
      %v423 = vld [vmem:[%s354 + $0xfc] sm:$0xf]
      %v424 = vld [vmem:[%s354 + $0x100] sm:$0xf]
      %v425 = vld [vmem:[%s354 + $0x104] sm:$0xf]
      %v426 = vld [vmem:[%s354 + $0x108] sm:$0xf]
      %v427 = vld [vmem:[%s354 + $0x10c] sm:$0xf]
      %v428 = vld [vmem:[%s354 + $0x110] sm:$0xf]
      %v429 = vld [vmem:[%s354 + $0x114] sm:$0xf]
      %v430 = vld [vmem:[%s354 + $0x118] sm:$0xf]
      %v431 = vld [vmem:[%s354 + $0x11c] sm:$0xf]
      %v432 = vld [vmem:[%s2] sm:$0xf]
      %v433 = vld [vmem:[%s2 + $0x4] sm:$0xf]
      %v434 = vld [vmem:[%s2 + $0x8] sm:$0xf]
      %v435 = vld [vmem:[%s2 + $0xc] sm:$0xf]
      %v436 = vld [vmem:[%s2 + $0x10] sm:$0xf]
      %v437 = vld [vmem:[%s2 + $0x14] sm:$0xf]
      %v438 = vld [vmem:[%s2 + $0x18] sm:$0xf]
      %v439 = vld [vmem:[%s2 + $0x1c] sm:$0xf]
      %v440 = vld [vmem:[%s2 + $0x20] sm:$0xf]
      %v441 = vld [vmem:[%s2 + $0x24] sm:$0xf]
      %v442 = vld [vmem:[%s2 + $0x28] sm:$0xf]
      %v443 = vld [vmem:[%s2 + $0x2c] sm:$0xf]
      %v444 = vld [vmem:[%s2 + $0x30] sm:$0xf]
      %v445 = vld [vmem:[%s2 + $0x34] sm:$0xf]
      %v446 = vld [vmem:[%s2 + $0x38] sm:$0xf]
      %v447 = vld [vmem:[%s2 + $0x3c] sm:$0xf]
      %v448 = vld [vmem:[%s3] sm:$0x1]
      %v450 = vperm.slane %v448, 0
      %v524 = vunpack.c.l.b16 %v360
      %v525 = vunpack.c.l.b16 %v361
      %v526 = vunpack.c.l.b16 %v362
      %v527 = vunpack.c.l.b16 %v363
      %v528 = vunpack.c.l.b16 %v364
      %v529 = vunpack.c.l.b16 %v365
      %v530 = vunpack.c.l.b16 %v366
      %v531 = vunpack.c.l.b16 %v367
      %v532 = vunpack.c.l.b16 %v368
      %v533 = vunpack.c.l.b16 %v369
      %v534 = vunpack.c.l.b16 %v370
      %v535 = vunpack.c.l.b16 %v371
      %v536 = vunpack.c.l.b16 %v372
      %v537 = vunpack.c.l.b16 %v373
      %v538 = vunpack.c.l.b16 %v374
      %v539 = vunpack.c.l.b16 %v375
      %v540 = vunpack.c.l.b16 %v376
      %v541 = vunpack.c.l.b16 %v377
      %v542 = vunpack.c.l.b16 %v378
      %v543 = vunpack.c.l.b16 %v379
      %v544 = vunpack.c.l.b16 %v380
      %v545 = vunpack.c.l.b16 %v381
      %v546 = vunpack.c.l.b16 %v382
      %v547 = vunpack.c.l.b16 %v383
      %v548 = vunpack.c.l.b16 %v384
      %v549 = vunpack.c.l.b16 %v385
      %v550 = vunpack.c.l.b16 %v386
      %v551 = vunpack.c.l.b16 %v387
      %v552 = vunpack.c.l.b16 %v388
      %v553 = vunpack.c.l.b16 %v389
      %v554 = vunpack.c.l.b16 %v390
      %v555 = vunpack.c.l.b16 %v391
      %v556 = vunpack.c.l.b16 %v392
      %v557 = vunpack.c.l.b16 %v393
      %v558 = vunpack.c.l.b16 %v394
      %v559 = vunpack.c.l.b16 %v395
      %v560 = vunpack.c.l.b16 %v396
      %v561 = vunpack.c.l.b16 %v397
      %v562 = vunpack.c.l.b16 %v398
      %v563 = vunpack.c.l.b16 %v399
      %v564 = vunpack.c.l.b16 %v400
      %v565 = vunpack.c.l.b16 %v401
      %v566 = vunpack.c.l.b16 %v402
      %v567 = vunpack.c.l.b16 %v403
      %v568 = vunpack.c.l.b16 %v404
      %v569 = vunpack.c.l.b16 %v405
      %v570 = vunpack.c.l.b16 %v406
      %v571 = vunpack.c.l.b16 %v407
      %v572 = vunpack.c.l.b16 %v408
      %v573 = vunpack.c.l.b16 %v409
      %v574 = vunpack.c.l.b16 %v410
      %v575 = vunpack.c.l.b16 %v411
      %v576 = vunpack.c.l.b16 %v412
      %v577 = vunpack.c.l.b16 %v413
      %v578 = vunpack.c.l.b16 %v414
      %v579 = vunpack.c.l.b16 %v415
      %v580 = vunpack.c.l.b16 %v416
      %v581 = vunpack.c.l.b16 %v417
      %v582 = vunpack.c.l.b16 %v418
      %v583 = vunpack.c.l.b16 %v419
      %v584 = vunpack.c.l.b16 %v420
      %v585 = vunpack.c.l.b16 %v421
      %v586 = vunpack.c.l.b16 %v422
      %v587 = vunpack.c.l.b16 %v423
      %v588 = vunpack.c.l.b16 %v424
      %v589 = vunpack.c.l.b16 %v425
      %v590 = vunpack.c.l.b16 %v426
      %v591 = vunpack.c.l.b16 %v427
      %v592 = vunpack.c.l.b16 %v428
      %v593 = vunpack.c.l.b16 %v429
      %v594 = vunpack.c.l.b16 %v430
      %v595 = vunpack.c.l.b16 %v431
      %v596 = vpack.c.b16 %v525, %v524
      %v597 = vpack.c.b16 %v527, %v526
      %v598 = vpack.c.b16 %v529, %v528
      %v599 = vpack.c.b16 %v531, %v530
      %v600 = vpack.c.b16 %v533, %v532
      %v601 = vpack.c.b16 %v535, %v534
      %v602 = vpack.c.b16 %v537, %v536
      %v603 = vpack.c.b16 %v539, %v538
      %v604 = vpack.c.b16 %v541, %v540
      %v605 = vpack.c.b16 %v543, %v542
      %v606 = vpack.c.b16 %v545, %v544
      %v607 = vpack.c.b16 %v547, %v546
      %v608 = vpack.c.b16 %v549, %v548
      %v609 = vpack.c.b16 %v551, %v550
      %v610 = vpack.c.b16 %v553, %v552
      %v611 = vpack.c.b16 %v555, %v554
      %v612 = vpack.c.b16 %v557, %v556
      %v613 = vpack.c.b16 %v559, %v558
      %v614 = vpack.c.b16 %v561, %v560
      %v615 = vpack.c.b16 %v563, %v562
      %v616 = vpack.c.b16 %v565, %v564
      %v617 = vpack.c.b16 %v567, %v566
      %v618 = vpack.c.b16 %v569, %v568
      %v619 = vpack.c.b16 %v571, %v570
      %v620 = vpack.c.b16 %v573, %v572
      %v621 = vpack.c.b16 %v575, %v574
      %v622 = vpack.c.b16 %v577, %v576
      %v623 = vpack.c.b16 %v579, %v578
      %v624 = vpack.c.b16 %v581, %v580
      %v625 = vpack.c.b16 %v583, %v582
      %v626 = vpack.c.b16 %v585, %v584
      %v627 = vpack.c.b16 %v587, %v586
      %v628 = vpack.c.b16 %v589, %v588
      %v629 = vpack.c.b16 %v591, %v590
      %v630 = vpack.c.b16 %v593, %v592
      %v631 = vpack.c.b16 %v595, %v594
      %v684 = vunpack.c.l.b16 %v432
      %v685 = vunpack.c.l.b16 %v433
      %v686 = vunpack.c.l.b16 %v434
      %v687 = vunpack.c.l.b16 %v435
      %v688 = vunpack.c.l.b16 %v436
      %v689 = vunpack.c.l.b16 %v437
      %v690 = vunpack.c.l.b16 %v438
      %v691 = vunpack.c.l.b16 %v439
      %v692 = vunpack.c.l.b16 %v440
      %v693 = vunpack.c.l.b16 %v441
      %v694 = vunpack.c.l.b16 %v442
      %v695 = vunpack.c.l.b16 %v443
      %v696 = vunpack.c.l.b16 %v444
      %v697 = vunpack.c.l.b16 %v445
      %v698 = vunpack.c.l.b16 %v446
      %v699 = vunpack.c.l.b16 %v447
      %v700 = vpack.c.b16 %v685, %v684
      %v701 = vpack.c.b16 %v687, %v686
      %v702 = vpack.c.b16 %v689, %v688
      %v703 = vpack.c.b16 %v691, %v690
      %v704 = vpack.c.b16 %v693, %v692
      %v705 = vpack.c.b16 %v695, %v694
      %v706 = vpack.c.b16 %v697, %v696
      %v707 = vpack.c.b16 %v699, %v698
      %716 = vmatpush.bf16.msra.mxu0 %v707
      %717 = vmatpush.bf16.msra.mxu0 %v706
      %718 = vmatpush.bf16.msra.mxu0 %v705
      %719 = vmatpush.bf16.msra.mxu0 %v704
      %720 = vmatpush.bf16.msra.mxu0 %v703
      %721 = vmatpush.bf16.msra.mxu0 %v702
      %722 = vmatpush.bf16.msra.mxu0 %v701
      %723 = vmatpush.bf16.msra.mxu0 %v700
      %724 = vmatmul.bf16.gmra.mxu0 %v596
      %v725 = vpop.f32.mrf.mxu0
      %v726 = vadd.f32 %v450, %v725
      %v727 = vpop.f32.mrf.mxu0
      %v728 = vadd.f32 %v450, %v727
      %729 = vmatmul.bf16.gmra.mxu0 %v597
      %v730 = vpop.f32.mrf.mxu0
      %v731 = vadd.f32 %v450, %v730
      %v732 = vpop.f32.mrf.mxu0
      %v733 = vadd.f32 %v450, %v732
      %734 = vmatmul.bf16.gmra.mxu0 %v598
      %v735 = vpop.f32.mrf.mxu0
      %v736 = vadd.f32 %v450, %v735
      %v737 = vpop.f32.mrf.mxu0
      %v738 = vadd.f32 %v450, %v737
      %739 = vmatmul.bf16.gmra.mxu0 %v599
      %v740 = vpop.f32.mrf.mxu0
      %v741 = vadd.f32 %v450, %v740
      %v742 = vpop.f32.mrf.mxu0
      %v743 = vadd.f32 %v450, %v742
      %744 = vmatmul.bf16.gmra.mxu0 %v600
      %v745 = vpop.f32.mrf.mxu0
      %v746 = vadd.f32 %v450, %v745
      %v747 = vpop.f32.mrf.mxu0
      %v748 = vadd.f32 %v450, %v747
      %749 = vmatmul.bf16.gmra.mxu0 %v601
      %v750 = vpop.f32.mrf.mxu0
      %v751 = vadd.f32 %v450, %v750
      %v752 = vpop.f32.mrf.mxu0
      %v753 = vadd.f32 %v450, %v752
      %754 = vmatmul.bf16.gmra.mxu0 %v602
      %v755 = vpop.f32.mrf.mxu0
      %v756 = vadd.f32 %v450, %v755
      %v757 = vpop.f32.mrf.mxu0
      %v758 = vadd.f32 %v450, %v757
      %759 = vmatmul.bf16.gmra.mxu0 %v603
      %v760 = vpop.f32.mrf.mxu0
      %v761 = vadd.f32 %v450, %v760
      %v762 = vpop.f32.mrf.mxu0
      %v763 = vadd.f32 %v450, %v762
      %764 = vmatmul.bf16.gmra.mxu0 %v604
      %v765 = vpop.f32.mrf.mxu0
      %v766 = vadd.f32 %v450, %v765
      %v767 = vpop.f32.mrf.mxu0
      %v768 = vadd.f32 %v450, %v767
      %769 = vmatmul.bf16.gmra.mxu0 %v605
      %v770 = vpop.f32.mrf.mxu0
      %v771 = vadd.f32 %v450, %v770
      %v772 = vpop.f32.mrf.mxu0
      %773 = vmatmul.bf16.gmra.mxu0 %v606
      %v774 = vpop.f32.mrf.mxu0
      %v775 = vadd.f32 %v450, %v774
      %v776 = vpop.f32.mrf.mxu0
      %777 = vmatmul.bf16.gmra.mxu0 %v607
      %v778 = vpop.f32.mrf.mxu0
      %v779 = vadd.f32 %v450, %v778
      %v780 = vpop.f32.mrf.mxu0
      %781 = vmatmul.bf16.gmra.mxu0 %v608
      %v782 = vpop.f32.mrf.mxu0
      %v783 = vadd.f32 %v450, %v782
      %v784 = vpop.f32.mrf.mxu0
      %785 = vmatmul.bf16.gmra.mxu0 %v609
      %v786 = vpop.f32.mrf.mxu0
      %v787 = vadd.f32 %v450, %v786
      %v788 = vpop.f32.mrf.mxu0
      %789 = vmatmul.bf16.gmra.mxu0 %v610
      %v790 = vpop.f32.mrf.mxu0
      %v791 = vadd.f32 %v450, %v790
      %v792 = vpop.f32.mrf.mxu0
      %793 = vmatmul.bf16.gmra.mxu0 %v611
      %v794 = vpop.f32.mrf.mxu0
      %v795 = vadd.f32 %v450, %v794
      %v796 = vpop.f32.mrf.mxu0
      %797 = vmatmul.bf16.gmra.mxu0 %v612
      %v798 = vpop.f32.mrf.mxu0
      %v799 = vadd.f32 %v450, %v798
      %v800 = vpop.f32.mrf.mxu0
      %801 = vmatmul.bf16.gmra.mxu0 %v613
      %v802 = vpop.f32.mrf.mxu0
      %v803 = vadd.f32 %v450, %v802
      %v804 = vpop.f32.mrf.mxu0
      %805 = vmatmul.bf16.gmra.mxu0 %v614
      %v806 = vpop.f32.mrf.mxu0
      %v807 = vadd.f32 %v450, %v806
      %v808 = vpop.f32.mrf.mxu0
      %v809 = vadd.f32 %v450, %v808
      %810 = vmatmul.bf16.gmra.mxu0 %v615
      %v811 = vpop.f32.mrf.mxu0
      %v812 = vadd.f32 %v450, %v811
      %v813 = vpop.f32.mrf.mxu0
      %v814 = vadd.f32 %v450, %v813
      %815 = vmatmul.bf16.gmra.mxu0 %v616
      %v816 = vpop.f32.mrf.mxu0
      %v817 = vadd.f32 %v450, %v816
      %v818 = vpop.f32.mrf.mxu0
      %v819 = vadd.f32 %v450, %v818
      %820 = vmatmul.bf16.gmra.mxu0 %v617
      %v821 = vpop.f32.mrf.mxu0
      %v822 = vadd.f32 %v450, %v821
      %v823 = vpop.f32.mrf.mxu0
      %v824 = vadd.f32 %v450, %v823
      %825 = vmatmul.bf16.gmra.mxu0 %v618
      %v826 = vpop.f32.mrf.mxu0
      %v827 = vadd.f32 %v450, %v826
      %v828 = vpop.f32.mrf.mxu0
      %v829 = vadd.f32 %v450, %v828
      %830 = vmatmul.bf16.gmra.mxu0 %v619
      %v831 = vpop.f32.mrf.mxu0
      %v832 = vadd.f32 %v450, %v831
      %v833 = vpop.f32.mrf.mxu0
      %v834 = vadd.f32 %v450, %v833
      %835 = vmatmul.bf16.gmra.mxu0 %v620
      %v836 = vpop.f32.mrf.mxu0
      %v837 = vadd.f32 %v450, %v836
      %v838 = vpop.f32.mrf.mxu0
      %v839 = vadd.f32 %v450, %v838
      %840 = vmatmul.bf16.gmra.mxu0 %v621
      %v841 = vpop.f32.mrf.mxu0
      %v842 = vadd.f32 %v450, %v841
      %v843 = vpop.f32.mrf.mxu0
      %v844 = vadd.f32 %v450, %v843
      %845 = vmatmul.bf16.gmra.mxu0 %v622
      %v846 = vpop.f32.mrf.mxu0
      %v847 = vpop.f32.mrf.mxu0
      %848 = vmatmul.bf16.gmra.mxu0 %v623
      %v849 = vpop.f32.mrf.mxu0
      %v850 = vadd.f32 %v450, %v849
      %v851 = vpop.f32.mrf.mxu0
      %852 = vmatmul.bf16.gmra.mxu0 %v624
      %v853 = vpop.f32.mrf.mxu0
      %v854 = vadd.f32 %v450, %v853
      %v855 = vpop.f32.mrf.mxu0
      %856 = vmatmul.bf16.gmra.mxu0 %v625
      %v857 = vpop.f32.mrf.mxu0
      %v858 = vadd.f32 %v450, %v857
      %v859 = vpop.f32.mrf.mxu0
      %860 = vmatmul.bf16.gmra.mxu0 %v626
      %v861 = vpop.f32.mrf.mxu0
      %v862 = vadd.f32 %v450, %v861
      %v863 = vpop.f32.mrf.mxu0
      %864 = vmatmul.bf16.gmra.mxu0 %v627
      %v865 = vpop.f32.mrf.mxu0
      %v866 = vadd.f32 %v450, %v865
      %v867 = vpop.f32.mrf.mxu0
      %868 = vmatmul.bf16.gmra.mxu0 %v628
      %v869 = vpop.f32.mrf.mxu0
      %v870 = vadd.f32 %v450, %v869
      %v871 = vpop.f32.mrf.mxu0
      %872 = vmatmul.bf16.gmra.mxu0 %v629
      %v873 = vpop.f32.mrf.mxu0
      %v874 = vadd.f32 %v450, %v873
      %v875 = vpop.f32.mrf.mxu0
      %876 = vmatmul.bf16.gmra.mxu0 %v630
      %v877 = vpop.f32.mrf.mxu0
      %v878 = vadd.f32 %v450, %v877
      %v879 = vpop.f32.mrf.mxu0
      %880 = vmatmul.bf16.gmra.mxu0 %v631
      %v881 = vpop.f32.mrf.mxu0
      %v882 = vpop.f32.mrf.mxu0
      %883 = vdwg.mxu0
      %v884 = vmax.f32 %v726, 0.0
      %v885 = vmax.f32 %v728, 0.0
      %v886 = vmax.f32 %v731, 0.0
      %v887 = vmax.f32 %v733, 0.0
      %v888 = vmax.f32 %v736, 0.0
      %v889 = vmax.f32 %v738, 0.0
      %v890 = vmax.f32 %v741, 0.0
      %v891 = vmax.f32 %v743, 0.0
      %v892 = vmax.f32 %v746, 0.0
      %v893 = vmax.f32 %v748, 0.0
      %v894 = vmax.f32 %v751, 0.0
      %v895 = vmax.f32 %v753, 0.0
      %v896 = vmax.f32 %v756, 0.0
      %v897 = vmax.f32 %v758, 0.0
      %v898 = vmax.f32 %v761, 0.0
      %v899 = vmax.f32 %v763, 0.0
      %v900 = vmax.f32 %v766, 0.0
      %v901 = vmax.f32 %v768, 0.0
      %v902 = vmax.f32 %v771, 0.0
      %v903 = vmax.f32 %v775, 0.0
      %v904 = vmax.f32 %v779, 0.0
      %v905 = vmax.f32 %v783, 0.0
      %v906 = vmax.f32 %v787, 0.0
      %v907 = vmax.f32 %v791, 0.0
      %v908 = vmax.f32 %v795, 0.0
      %v909 = vmax.f32 %v799, 0.0
      %v910 = vmax.f32 %v803, 0.0
      %v911 = vmax.f32 %v807, 0.0
      %v912 = vmax.f32 %v809, 0.0
      %v913 = vmax.f32 %v812, 0.0
      %v914 = vmax.f32 %v814, 0.0
      %v915 = vmax.f32 %v817, 0.0
      %v916 = vmax.f32 %v819, 0.0
      %v917 = vmax.f32 %v822, 0.0
      %v918 = vmax.f32 %v824, 0.0
      %v919 = vmax.f32 %v827, 0.0
      %v920 = vmax.f32 %v829, 0.0
      %v921 = vmax.f32 %v832, 0.0
      %v922 = vmax.f32 %v834, 0.0
      %v923 = vmax.f32 %v837, 0.0
      %v924 = vmax.f32 %v839, 0.0
      %v925 = vmax.f32 %v842, 0.0
      %v926 = vmax.f32 %v844, 0.0
      %v927 = vmax.f32 %v850, 0.0
      %v928 = vmax.f32 %v854, 0.0
      %v929 = vmax.f32 %v858, 0.0
      %v930 = vmax.f32 %v862, 0.0
      %v931 = vmax.f32 %v866, 0.0
      %v932 = vmax.f32 %v870, 0.0
      %v933 = vmax.f32 %v874, 0.0
      %v934 = vmax.f32 %v878, 0.0
      %v935 = vld [vmem:[%s1] sm:$0xff]
      %v936 = vld [vmem:[%s1 + $0x8] sm:$0xff]
      %v937 = vld [vmem:[%s1 + $0x10] sm:$0xff]
      %v938 = vld [vmem:[%s1 + $0x18] sm:$0xff]
      %v939 = vld [vmem:[%s1 + $0x20] sm:$0xff]
      %v940 = vld [vmem:[%s1 + $0x28] sm:$0xff]
      %v941 = vld [vmem:[%s1 + $0x30] sm:$0xff]
      %v942 = vld [vmem:[%s1 + $0x38] sm:$0xff]
      %v943 = vld [vmem:[%s1 + $0x40] sm:$0xff]
      %v944 = vld [vmem:[%s1 + $0x48] sm:$0xff]
      %v945 = vld [vmem:[%s1 + $0x50] sm:$0xff]
      %v946 = vld [vmem:[%s1 + $0x58] sm:$0xff]
      %v947 = vld [vmem:[%s1 + $0x60] sm:$0xff]
      %v948 = vld [vmem:[%s1 + $0x68] sm:$0xff]
      %v949 = vld [vmem:[%s1 + $0x70] sm:$0xff]
      %v950 = vld [vmem:[%s1 + $0x78] sm:$0xff]
      %v951 = vld [vmem:[%s1 + $0x80] sm:$0xff]
      %v952 = vld [vmem:[%s1 + $0x88] sm:$0xff]
      %v953 = vld [vmem:[%s1 + $0x90] sm:$0xff]
      %v954 = vld [vmem:[%s1 + $0xa0] sm:$0xff]
      %v955 = vld [vmem:[%s1 + $0xb0] sm:$0xff]
      %v956 = vld [vmem:[%s1 + $0xc0] sm:$0xff]
      %v957 = vld [vmem:[%s1 + $0xd0] sm:$0xff]
      %v958 = vld [vmem:[%s1 + $0xe0] sm:$0xff]
      %v959 = vld [vmem:[%s1 + $0xf0] sm:$0xff]
      %v960 = vld [vmem:[%s1 + $0x100] sm:$0xff]
      %v961 = vld [vmem:[%s1 + $0x110] sm:$0xff]
      %v962 = vld [vmem:[%s1 + $0x120] sm:$0xff]
      %v963 = vld [vmem:[%s1 + $0x128] sm:$0xff]
      %v964 = vld [vmem:[%s1 + $0x130] sm:$0xff]
      %v965 = vld [vmem:[%s1 + $0x138] sm:$0xff]
      %v966 = vld [vmem:[%s1 + $0x140] sm:$0xff]
      %v967 = vld [vmem:[%s1 + $0x148] sm:$0xff]
      %v968 = vld [vmem:[%s1 + $0x150] sm:$0xff]
      %v969 = vld [vmem:[%s1 + $0x158] sm:$0xff]
      %v970 = vld [vmem:[%s1 + $0x160] sm:$0xff]
      %v971 = vld [vmem:[%s1 + $0x168] sm:$0xff]
      %v972 = vld [vmem:[%s1 + $0x170] sm:$0xff]
      %v973 = vld [vmem:[%s1 + $0x178] sm:$0xff]
      %v974 = vld [vmem:[%s1 + $0x180] sm:$0xff]
      %v975 = vld [vmem:[%s1 + $0x188] sm:$0xff]
      %v976 = vld [vmem:[%s1 + $0x190] sm:$0xff]
      %v977 = vld [vmem:[%s1 + $0x198] sm:$0xff]
      %v978 = vld [vmem:[%s1 + $0x1b0] sm:$0xff]
      %v979 = vld [vmem:[%s1 + $0x1c0] sm:$0xff]
      %v980 = vld [vmem:[%s1 + $0x1d0] sm:$0xff]
      %v981 = vld [vmem:[%s1 + $0x1e0] sm:$0xff]
      %v982 = vld [vmem:[%s1 + $0x1f0] sm:$0xff]
      %v983 = vld [vmem:[%s1 + $0x200] sm:$0xff]
      %v984 = vld [vmem:[%s1 + $0x210] sm:$0xff]
      %v985 = vld [vmem:[%s1 + $0x220] sm:$0xff]
      %987 = vset.pattern.permute.xlu0 0
      %988 = vperm.xlu0 %987, %v935
      %v989 = vpop.permute.xlu0 %988
      %992 = vset.pattern.permute.xlu0 0
      %993 = vperm.xlu0 %992, %v936
      %v994 = vpop.permute.xlu0 %993
      %997 = vset.pattern.permute.xlu0 0
      %998 = vperm.xlu0 %997, %v937
      %v999 = vpop.permute.xlu0 %998
      %1002 = vset.pattern.permute.xlu0 0
      %1003 = vperm.xlu0 %1002, %v938
      %v1004 = vpop.permute.xlu0 %1003
      %1007 = vset.pattern.permute.xlu0 0
      %1008 = vperm.xlu0 %1007, %v939
      %v1009 = vpop.permute.xlu0 %1008
      %1012 = vset.pattern.permute.xlu0 0
      %1013 = vperm.xlu0 %1012, %v940
      %v1014 = vpop.permute.xlu0 %1013
      %1017 = vset.pattern.permute.xlu0 0
      %1018 = vperm.xlu0 %1017, %v941
      %v1019 = vpop.permute.xlu0 %1018
      %1022 = vset.pattern.permute.xlu0 0
      %1023 = vperm.xlu0 %1022, %v942
      %v1024 = vpop.permute.xlu0 %1023
      %1027 = vset.pattern.permute.xlu0 0
      %1028 = vperm.xlu0 %1027, %v943
      %v1029 = vpop.permute.xlu0 %1028
      %1032 = vset.pattern.permute.xlu0 0
      %1033 = vperm.xlu0 %1032, %v944
      %v1034 = vpop.permute.xlu0 %1033
      %1037 = vset.pattern.permute.xlu0 0
      %1038 = vperm.xlu0 %1037, %v945
      %v1039 = vpop.permute.xlu0 %1038
      %1042 = vset.pattern.permute.xlu0 0
      %1043 = vperm.xlu0 %1042, %v946
      %v1044 = vpop.permute.xlu0 %1043
      %1047 = vset.pattern.permute.xlu0 0
      %1048 = vperm.xlu0 %1047, %v947
      %v1049 = vpop.permute.xlu0 %1048
      %1052 = vset.pattern.permute.xlu0 0
      %1053 = vperm.xlu0 %1052, %v948
      %v1054 = vpop.permute.xlu0 %1053
      %1057 = vset.pattern.permute.xlu0 0
      %1058 = vperm.xlu0 %1057, %v949
      %v1059 = vpop.permute.xlu0 %1058
      %1062 = vset.pattern.permute.xlu0 0
      %1063 = vperm.xlu0 %1062, %v950
      %v1064 = vpop.permute.xlu0 %1063
      %1067 = vset.pattern.permute.xlu0 0
      %1068 = vperm.xlu0 %1067, %v951
      %v1069 = vpop.permute.xlu0 %1068
      %1072 = vset.pattern.permute.xlu0 0
      %1073 = vperm.xlu0 %1072, %v952
      %v1074 = vpop.permute.xlu0 %1073
      %1077 = vset.pattern.permute.xlu0 0
      %1078 = vperm.xlu0 %1077, %v953
      %v1079 = vpop.permute.xlu0 %1078
      %1082 = vset.pattern.permute.xlu0 0
      %1083 = vperm.xlu0 %1082, %v954
      %v1084 = vpop.permute.xlu0 %1083
      %1087 = vset.pattern.permute.xlu0 0
      %1088 = vperm.xlu0 %1087, %v955
      %v1089 = vpop.permute.xlu0 %1088
      %1092 = vset.pattern.permute.xlu0 0
      %1093 = vperm.xlu0 %1092, %v956
      %v1094 = vpop.permute.xlu0 %1093
      %1097 = vset.pattern.permute.xlu0 0
      %1098 = vperm.xlu0 %1097, %v957
      %v1099 = vpop.permute.xlu0 %1098
      %1102 = vset.pattern.permute.xlu0 0
      %1103 = vperm.xlu0 %1102, %v958
      %v1104 = vpop.permute.xlu0 %1103
      %1107 = vset.pattern.permute.xlu0 0
      %1108 = vperm.xlu0 %1107, %v959
      %v1109 = vpop.permute.xlu0 %1108
      %1112 = vset.pattern.permute.xlu0 0
      %1113 = vperm.xlu0 %1112, %v960
      %v1114 = vpop.permute.xlu0 %1113
      %1117 = vset.pattern.permute.xlu0 0
      %1118 = vperm.xlu0 %1117, %v961
      %v1119 = vpop.permute.xlu0 %1118
      %1122 = vset.pattern.permute.xlu0 0
      %1123 = vperm.xlu0 %1122, %v962
      %v1124 = vpop.permute.xlu0 %1123
      %1127 = vset.pattern.permute.xlu0 0
      %1128 = vperm.xlu0 %1127, %v963
      %v1129 = vpop.permute.xlu0 %1128
      %1132 = vset.pattern.permute.xlu0 0
      %1133 = vperm.xlu0 %1132, %v964
      %v1134 = vpop.permute.xlu0 %1133
      %1137 = vset.pattern.permute.xlu0 0
      %1138 = vperm.xlu0 %1137, %v965
      %v1139 = vpop.permute.xlu0 %1138
      %1142 = vset.pattern.permute.xlu0 0
      %1143 = vperm.xlu0 %1142, %v966
      %v1144 = vpop.permute.xlu0 %1143
      %1147 = vset.pattern.permute.xlu0 0
      %1148 = vperm.xlu0 %1147, %v967
      %v1149 = vpop.permute.xlu0 %1148
      %1152 = vset.pattern.permute.xlu0 0
      %1153 = vperm.xlu0 %1152, %v968
      %v1154 = vpop.permute.xlu0 %1153
      %1157 = vset.pattern.permute.xlu0 0
      %1158 = vperm.xlu0 %1157, %v969
      %v1159 = vpop.permute.xlu0 %1158
      %1162 = vset.pattern.permute.xlu0 0
      %1163 = vperm.xlu0 %1162, %v970
      %v1164 = vpop.permute.xlu0 %1163
      %1167 = vset.pattern.permute.xlu0 0
      %1168 = vperm.xlu0 %1167, %v971
      %v1169 = vpop.permute.xlu0 %1168
      %1172 = vset.pattern.permute.xlu0 0
      %1173 = vperm.xlu0 %1172, %v972
      %v1174 = vpop.permute.xlu0 %1173
      %1177 = vset.pattern.permute.xlu0 0
      %1178 = vperm.xlu0 %1177, %v973
      %v1179 = vpop.permute.xlu0 %1178
      %1182 = vset.pattern.permute.xlu0 0
      %1183 = vperm.xlu0 %1182, %v974
      %v1184 = vpop.permute.xlu0 %1183
      %1187 = vset.pattern.permute.xlu0 0
      %1188 = vperm.xlu0 %1187, %v975
      %v1189 = vpop.permute.xlu0 %1188
      %1192 = vset.pattern.permute.xlu0 0
      %1193 = vperm.xlu0 %1192, %v976
      %v1194 = vpop.permute.xlu0 %1193
      %1197 = vset.pattern.permute.xlu0 0
      %1198 = vperm.xlu0 %1197, %v977
      %v1199 = vpop.permute.xlu0 %1198
      %1202 = vset.pattern.permute.xlu0 0
      %1203 = vperm.xlu0 %1202, %v978
      %v1204 = vpop.permute.xlu0 %1203
      %1207 = vset.pattern.permute.xlu0 0
      %1208 = vperm.xlu0 %1207, %v979
      %v1209 = vpop.permute.xlu0 %1208
      %1212 = vset.pattern.permute.xlu0 0
      %1213 = vperm.xlu0 %1212, %v980
      %v1214 = vpop.permute.xlu0 %1213
      %1217 = vset.pattern.permute.xlu0 0
      %1218 = vperm.xlu0 %1217, %v981
      %v1219 = vpop.permute.xlu0 %1218
      %1222 = vset.pattern.permute.xlu0 0
      %1223 = vperm.xlu0 %1222, %v982
      %v1224 = vpop.permute.xlu0 %1223
      %1227 = vset.pattern.permute.xlu0 0
      %1228 = vperm.xlu0 %1227, %v983
      %v1229 = vpop.permute.xlu0 %1228
      %1232 = vset.pattern.permute.xlu0 0
      %1233 = vperm.xlu0 %1232, %v984
      %v1234 = vpop.permute.xlu0 %1233
      %1237 = vset.pattern.permute.xlu0 0
      %1238 = vperm.xlu0 %1237, %v985
      %v1239 = vpop.permute.xlu0 %1238
      %v1241 = vmul.f32 %v884, %v989
      %v1242 = vmul.f32 %v885, %v994
      %v1243 = vmul.f32 %v886, %v999
      %v1244 = vmul.f32 %v887, %v1004
      %v1245 = vmul.f32 %v888, %v1009
      %v1246 = vmul.f32 %v889, %v1014
      %v1247 = vmul.f32 %v890, %v1019
      %v1248 = vmul.f32 %v891, %v1024
      %v1249 = vmul.f32 %v892, %v1029
      %v1250 = vmul.f32 %v893, %v1034
      %v1251 = vmul.f32 %v894, %v1039
      %v1252 = vmul.f32 %v895, %v1044
      %v1253 = vmul.f32 %v896, %v1049
      %v1254 = vmul.f32 %v897, %v1054
      %v1255 = vmul.f32 %v898, %v1059
      %v1256 = vmul.f32 %v899, %v1064
      %v1257 = vmul.f32 %v900, %v1069
      %v1258 = vmul.f32 %v901, %v1074
      %v1259 = vmul.f32 %v902, %v1079
      %v1260 = vmul.f32 %v903, %v1084
      %v1261 = vmul.f32 %v904, %v1089
      %v1262 = vmul.f32 %v905, %v1094
      %v1263 = vmul.f32 %v906, %v1099
      %v1264 = vmul.f32 %v907, %v1104
      %v1265 = vmul.f32 %v908, %v1109
      %v1266 = vmul.f32 %v909, %v1114
      %v1267 = vmul.f32 %v910, %v1119
      %v1268 = vmul.f32 %v911, %v1124
      %v1269 = vmul.f32 %v912, %v1129
      %v1270 = vmul.f32 %v913, %v1134
      %v1271 = vmul.f32 %v914, %v1139
      %v1272 = vmul.f32 %v915, %v1144
      %v1273 = vmul.f32 %v916, %v1149
      %v1274 = vmul.f32 %v917, %v1154
      %v1275 = vmul.f32 %v918, %v1159
      %v1276 = vmul.f32 %v919, %v1164
      %v1277 = vmul.f32 %v920, %v1169
      %v1278 = vmul.f32 %v921, %v1174
      %v1279 = vmul.f32 %v922, %v1179
      %v1280 = vmul.f32 %v923, %v1184
      %v1281 = vmul.f32 %v924, %v1189
      %v1282 = vmul.f32 %v925, %v1194
      %v1283 = vmul.f32 %v926, %v1199
      %v1284 = vmul.f32 %v927, %v1204
      %v1285 = vmul.f32 %v928, %v1209
      %v1286 = vmul.f32 %v929, %v1214
      %v1287 = vmul.f32 %v930, %v1219
      %v1288 = vmul.f32 %v931, %v1224
      %v1289 = vmul.f32 %v932, %v1229
      %v1290 = vmul.f32 %v933, %v1234
      %v1291 = vmul.f32 %v934, %v1239
      %v1292 = vpack.c.bf16 %v1241, %v1241
      %v1293 = vpack.c.bf16 %v1242, %v1242
      %v1294 = vpack.c.bf16 %v1243, %v1243
      %v1295 = vpack.c.bf16 %v1244, %v1244
      %v1296 = vpack.c.bf16 %v1245, %v1245
      %v1297 = vpack.c.bf16 %v1246, %v1246
      %v1298 = vpack.c.bf16 %v1247, %v1247
      %v1299 = vpack.c.bf16 %v1248, %v1248
      %v1300 = vpack.c.bf16 %v1249, %v1249
      %v1301 = vpack.c.bf16 %v1250, %v1250
      %v1302 = vpack.c.bf16 %v1251, %v1251
      %v1303 = vpack.c.bf16 %v1252, %v1252
      %v1304 = vpack.c.bf16 %v1253, %v1253
      %v1305 = vpack.c.bf16 %v1254, %v1254
      %v1306 = vpack.c.bf16 %v1255, %v1255
      %v1307 = vpack.c.bf16 %v1256, %v1256
      %v1308 = vpack.c.bf16 %v1257, %v1257
      %v1309 = vpack.c.bf16 %v1258, %v1258
      %v1310 = vpack.c.bf16 %v1259, %v1259
      %v1311 = vpack.c.bf16 %v1260, %v1260
      %v1312 = vpack.c.bf16 %v1261, %v1261
      %v1313 = vpack.c.bf16 %v1262, %v1262
      %v1314 = vpack.c.bf16 %v1263, %v1263
      %v1315 = vpack.c.bf16 %v1264, %v1264
      %v1316 = vpack.c.bf16 %v1265, %v1265
      %v1317 = vpack.c.bf16 %v1266, %v1266
      %v1318 = vpack.c.bf16 %v1267, %v1267
      %v1319 = vpack.c.bf16 %v1268, %v1268
      %v1320 = vpack.c.bf16 %v1269, %v1269
      %v1321 = vpack.c.bf16 %v1270, %v1270
      %v1322 = vpack.c.bf16 %v1271, %v1271
      %v1323 = vpack.c.bf16 %v1272, %v1272
      %v1324 = vpack.c.bf16 %v1273, %v1273
      %v1325 = vpack.c.bf16 %v1274, %v1274
      %v1326 = vpack.c.bf16 %v1275, %v1275
      %v1327 = vpack.c.bf16 %v1276, %v1276
      %v1328 = vpack.c.bf16 %v1277, %v1277
      %v1329 = vpack.c.bf16 %v1278, %v1278
      %v1330 = vpack.c.bf16 %v1279, %v1279
      %v1331 = vpack.c.bf16 %v1280, %v1280
      %v1332 = vpack.c.bf16 %v1281, %v1281
      %v1333 = vpack.c.bf16 %v1282, %v1282
      %v1334 = vpack.c.bf16 %v1283, %v1283
      %v1335 = vpack.c.bf16 %v1284, %v1284
      %v1336 = vpack.c.bf16 %v1285, %v1285
      %v1337 = vpack.c.bf16 %v1286, %v1286
      %v1338 = vpack.c.bf16 %v1287, %v1287
      %v1339 = vpack.c.bf16 %v1288, %v1288
      %v1340 = vpack.c.bf16 %v1289, %v1289
      %v1341 = vpack.c.bf16 %v1290, %v1290
      %v1342 = vpack.c.bf16 %v1291, %v1291
      %v1343 = vld [vmem:[%s7] sm:$0x1]
      %v1345 = vperm.slane %v1343, 0
      %v1347 = vadd.f32 %v1345, 0.0
      %v1348 = vld [vmem:[%s4] sm:$0xf]
      %v1349 = vld [vmem:[%s4 + $0x4] sm:$0xf]
      %v1350 = vld [vmem:[%s4 + $0x8] sm:$0xf]
      %v1351 = vld [vmem:[%s4 + $0xc] sm:$0xf]
      %v1352 = vld [vmem:[%s4 + $0x10] sm:$0xf]
      %v1353 = vld [vmem:[%s4 + $0x14] sm:$0xf]
      %v1354 = vld [vmem:[%s4 + $0x18] sm:$0xf]
      %v1355 = vld [vmem:[%s4 + $0x1c] sm:$0xf]
      %v1356 = vld [vmem:[%s4 + $0x20] sm:$0xf]
      %v1357 = vld [vmem:[%s4 + $0x24] sm:$0xf]
      %v1358 = vld [vmem:[%s4 + $0x28] sm:$0xf]
      %v1359 = vld [vmem:[%s4 + $0x2c] sm:$0xf]
      %v1360 = vld [vmem:[%s4 + $0x30] sm:$0xf]
      %v1361 = vld [vmem:[%s4 + $0x34] sm:$0xf]
      %v1362 = vld [vmem:[%s4 + $0x38] sm:$0xf]
      %v1363 = vld [vmem:[%s4 + $0x3c] sm:$0xf]
      %s1364 = scalar_lea.vmem %s4, 64
      %v1365 = vld [vmem:[%s1364] sm:$0xf]
      %v1366 = vld [vmem:[%s1364 + $0x4] sm:$0xf]
      %v1367 = vld [vmem:[%s1364 + $0x8] sm:$0xf]
      %v1368 = vld [vmem:[%s1364 + $0xc] sm:$0xf]
      %v1369 = vld [vmem:[%s1364 + $0x10] sm:$0xf]
      %v1370 = vld [vmem:[%s1364 + $0x14] sm:$0xf]
      %v1371 = vld [vmem:[%s1364 + $0x18] sm:$0xf]
      %v1372 = vld [vmem:[%s1364 + $0x1c] sm:$0xf]
      %v1373 = vld [vmem:[%s1364 + $0x20] sm:$0xf]
      %v1374 = vld [vmem:[%s1364 + $0x24] sm:$0xf]
      %v1375 = vld [vmem:[%s1364 + $0x28] sm:$0xf]
      %v1376 = vld [vmem:[%s1364 + $0x2c] sm:$0xf]
      %v1377 = vld [vmem:[%s1364 + $0x30] sm:$0xf]
      %v1378 = vld [vmem:[%s1364 + $0x34] sm:$0xf]
      %v1379 = vld [vmem:[%s1364 + $0x38] sm:$0xf]
      %v1380 = vld [vmem:[%s1364 + $0x3c] sm:$0xf]
      %v1389 = vunpack.c.l.b16 %v1310
      %v1390 = vunpack.c.l.b16 %v1311
      %v1391 = vunpack.c.l.b16 %v1312
      %v1392 = vunpack.c.l.b16 %v1313
      %v1393 = vunpack.c.l.b16 %v1314
      %v1394 = vunpack.c.l.b16 %v1315
      %v1395 = vunpack.c.l.b16 %v1316
      %v1396 = vunpack.c.l.b16 %v1317
      %v1397 = vpack.c.b16 %v1390, %v1389
      %v1398 = vpack.c.b16 %v1392, %v1391
      %v1399 = vpack.c.b16 %v1394, %v1393
      %v1400 = vpack.c.b16 %v1396, %v1395
      %v1421 = vunpack.c.l.b16 %v1365
      %v1422 = vunpack.c.l.b16 %v1366
      %v1423 = vunpack.c.l.b16 %v1367
      %v1424 = vunpack.c.l.b16 %v1368
      %v1425 = vunpack.c.l.b16 %v1369
      %v1426 = vunpack.c.l.b16 %v1370
      %v1427 = vunpack.c.l.b16 %v1371
      %v1428 = vunpack.c.l.b16 %v1372
      %v1429 = vunpack.c.l.b16 %v1373
      %v1430 = vunpack.c.l.b16 %v1374
      %v1431 = vunpack.c.l.b16 %v1375
      %v1432 = vunpack.c.l.b16 %v1376
      %v1433 = vunpack.c.l.b16 %v1377
      %v1434 = vunpack.c.l.b16 %v1378
      %v1435 = vunpack.c.l.b16 %v1379
      %v1436 = vunpack.c.l.b16 %v1380
      %v1437 = vpack.c.b16 %v1422, %v1421
      %v1438 = vpack.c.b16 %v1424, %v1423
      %v1439 = vpack.c.b16 %v1426, %v1425
      %v1440 = vpack.c.b16 %v1428, %v1427
      %v1441 = vpack.c.b16 %v1430, %v1429
      %v1442 = vpack.c.b16 %v1432, %v1431
      %v1443 = vpack.c.b16 %v1434, %v1433
      %v1444 = vpack.c.b16 %v1436, %v1435
      %1453 = vmatpush.bf16.msra.mxu0 %v1444
      %1454 = vmatpush.bf16.msra.mxu0 %v1443
      %1455 = vmatpush.bf16.msra.mxu0 %v1442
      %1456 = vmatpush.bf16.msra.mxu0 %v1441
      %1457 = vmatpush.bf16.msra.mxu0 %v1440
      %1458 = vmatpush.bf16.msra.mxu0 %v1439
      %1459 = vmatpush.bf16.msra.mxu0 %v1438
      %1460 = vmatpush.bf16.msra.mxu0 %v1437
      %1461 = vmatmul.bf16.gmra.mxu0 %v1397
      %v1462 = vpop.f32.mrf.mxu0
      %v1463 = vadd.f32 0.0, %v1462
      %v1464 = vpop.f32.mrf.mxu0
      %v1465 = vadd.f32 0.0, %v1464
      %1466 = vmatmul.bf16.gmra.mxu0 %v1398
      %v1467 = vpop.f32.mrf.mxu0
      %v1468 = vadd.f32 0.0, %v1467
      %v1469 = vpop.f32.mrf.mxu0
      %v1470 = vadd.f32 0.0, %v1469
      %1471 = vmatmul.bf16.gmra.mxu0 %v1399
      %v1472 = vpop.f32.mrf.mxu0
      %v1473 = vadd.f32 0.0, %v1472
      %v1474 = vpop.f32.mrf.mxu0
      %v1475 = vadd.f32 0.0, %v1474
      %1476 = vmatmul.bf16.gmra.mxu0 %v1400
      %v1477 = vpop.f32.mrf.mxu0
      %v1478 = vadd.f32 0.0, %v1477
      %v1479 = vpop.f32.mrf.mxu0
      %v1480 = vadd.f32 0.0, %v1479
      %1481 = vdwg.mxu0
      %v1490 = vunpack.c.l.b16 %v1292
      %v1491 = vunpack.c.l.b16 %v1294
      %v1492 = vunpack.c.l.b16 %v1296
      %v1493 = vunpack.c.l.b16 %v1298
      %v1494 = vunpack.c.l.b16 %v1300
      %v1495 = vunpack.c.l.b16 %v1302
      %v1496 = vunpack.c.l.b16 %v1304
      %v1497 = vunpack.c.l.b16 %v1306
      %v1498 = vpack.c.b16 %v1491, %v1490
      %v1499 = vpack.c.b16 %v1493, %v1492
      %v1500 = vpack.c.b16 %v1495, %v1494
      %v1501 = vpack.c.b16 %v1497, %v1496
      %v1522 = vunpack.c.l.b16 %v1348
      %v1523 = vunpack.c.l.b16 %v1349
      %v1524 = vunpack.c.l.b16 %v1350
      %v1525 = vunpack.c.l.b16 %v1351
      %v1526 = vunpack.c.l.b16 %v1352
      %v1527 = vunpack.c.l.b16 %v1353
      %v1528 = vunpack.c.l.b16 %v1354
      %v1529 = vunpack.c.l.b16 %v1355
      %v1530 = vunpack.c.l.b16 %v1356
      %v1531 = vunpack.c.l.b16 %v1357
      %v1532 = vunpack.c.l.b16 %v1358
      %v1533 = vunpack.c.l.b16 %v1359
      %v1534 = vunpack.c.l.b16 %v1360
      %v1535 = vunpack.c.l.b16 %v1361
      %v1536 = vunpack.c.l.b16 %v1362
      %v1537 = vunpack.c.l.b16 %v1363
      %v1538 = vpack.c.b16 %v1523, %v1522
      %v1539 = vpack.c.b16 %v1525, %v1524
      %v1540 = vpack.c.b16 %v1527, %v1526
      %v1541 = vpack.c.b16 %v1529, %v1528
      %v1542 = vpack.c.b16 %v1531, %v1530
      %v1543 = vpack.c.b16 %v1533, %v1532
      %v1544 = vpack.c.b16 %v1535, %v1534
      %v1545 = vpack.c.b16 %v1537, %v1536
      %1554 = vmatpush.bf16.msra.mxu0 %v1545
      %1555 = vmatpush.bf16.msra.mxu0 %v1544
      %1556 = vmatpush.bf16.msra.mxu0 %v1543
      %1557 = vmatpush.bf16.msra.mxu0 %v1542
      %1558 = vmatpush.bf16.msra.mxu0 %v1541
      %1559 = vmatpush.bf16.msra.mxu0 %v1540
      %1560 = vmatpush.bf16.msra.mxu0 %v1539
      %1561 = vmatpush.bf16.msra.mxu0 %v1538
      %1562 = vmatmul.bf16.gmra.mxu0 %v1498
      %v1563 = vpop.f32.mrf.mxu0
      %v1564 = vadd.f32 %v1463, %v1563
      %v1565 = vpop.f32.mrf.mxu0
      %v1566 = vadd.f32 %v1465, %v1565
      %1567 = vmatmul.bf16.gmra.mxu0 %v1499
      %v1568 = vpop.f32.mrf.mxu0
      %v1569 = vadd.f32 %v1468, %v1568
      %v1570 = vpop.f32.mrf.mxu0
      %v1571 = vadd.f32 %v1470, %v1570
      %1572 = vmatmul.bf16.gmra.mxu0 %v1500
      %v1573 = vpop.f32.mrf.mxu0
      %v1574 = vadd.f32 %v1473, %v1573
      %v1575 = vpop.f32.mrf.mxu0
      %v1576 = vadd.f32 %v1475, %v1575
      %1577 = vmatmul.bf16.gmra.mxu0 %v1501
      %v1578 = vpop.f32.mrf.mxu0
      %v1579 = vadd.f32 %v1478, %v1578
      %v1580 = vpop.f32.mrf.mxu0
      %v1581 = vadd.f32 %v1480, %v1580
      %1582 = vdwg.mxu0
      %vm1583 = vsmask.f32 3328
      %vm1584 = vsmask.f32 7440
      %vm1585 = vmor %vm1583, %vm1584
      %v1587 = vshrl.u32 %v1292, 16
      %v1589 = vrot.slane %v1587, 4
      %v1590 = vshll.u32 %v1292, 16
      %v1592 = vrot.slane %v1590, 5
      %v1593 = vor.u32 %v1589, %v1592
      %v1594 = vrot.slane %v1593, 4
      %v1596 = vshll.u32 %v1293, 16
      %v1598 = vrot.slane %v1596, 5
      %v1599 = vsel %vm1585, %v1594, %v1598
      %v1601 = vshrl.u32 %v1294, 16
      %v1603 = vrot.slane %v1601, 4
      %v1604 = vshll.u32 %v1294, 16
      %v1606 = vrot.slane %v1604, 5
      %v1607 = vor.u32 %v1603, %v1606
      %v1608 = vrot.slane %v1607, 4
      %v1610 = vshll.u32 %v1295, 16
      %v1612 = vrot.slane %v1610, 5
      %v1613 = vsel %vm1585, %v1608, %v1612
      %v1615 = vshrl.u32 %v1296, 16
      %v1617 = vrot.slane %v1615, 4
      %v1618 = vshll.u32 %v1296, 16
      %v1620 = vrot.slane %v1618, 5
      %v1621 = vor.u32 %v1617, %v1620
      %v1622 = vrot.slane %v1621, 4
      %v1624 = vshll.u32 %v1297, 16
      %v1626 = vrot.slane %v1624, 5
      %v1627 = vsel %vm1585, %v1622, %v1626
      %v1629 = vshrl.u32 %v1298, 16
      %v1631 = vrot.slane %v1629, 4
      %v1632 = vshll.u32 %v1298, 16
      %v1634 = vrot.slane %v1632, 5
      %v1635 = vor.u32 %v1631, %v1634
      %v1636 = vrot.slane %v1635, 4
      %v1638 = vshll.u32 %v1299, 16
      %v1640 = vrot.slane %v1638, 5
      %v1641 = vsel %vm1585, %v1636, %v1640
      %v1643 = vshrl.u32 %v1300, 16
      %v1645 = vrot.slane %v1643, 4
      %v1646 = vshll.u32 %v1300, 16
      %v1648 = vrot.slane %v1646, 5
      %v1649 = vor.u32 %v1645, %v1648
      %v1650 = vrot.slane %v1649, 4
      %v1652 = vshll.u32 %v1301, 16
      %v1654 = vrot.slane %v1652, 5
      %v1655 = vsel %vm1585, %v1650, %v1654
      %v1657 = vshrl.u32 %v1302, 16
      %v1659 = vrot.slane %v1657, 4
      %v1660 = vshll.u32 %v1302, 16
      %v1662 = vrot.slane %v1660, 5
      %v1663 = vor.u32 %v1659, %v1662
      %v1664 = vrot.slane %v1663, 4
      %v1666 = vshll.u32 %v1303, 16
      %v1668 = vrot.slane %v1666, 5
      %v1669 = vsel %vm1585, %v1664, %v1668
      %v1671 = vshrl.u32 %v1304, 16
      %v1673 = vrot.slane %v1671, 4
      %v1674 = vshll.u32 %v1304, 16
      %v1676 = vrot.slane %v1674, 5
      %v1677 = vor.u32 %v1673, %v1676
      %v1678 = vrot.slane %v1677, 4
      %v1680 = vshll.u32 %v1305, 16
      %v1682 = vrot.slane %v1680, 5
      %v1683 = vsel %vm1585, %v1678, %v1682
      %v1685 = vshrl.u32 %v1306, 16
      %v1687 = vrot.slane %v1685, 4
      %v1688 = vshll.u32 %v1306, 16
      %v1690 = vrot.slane %v1688, 5
      %v1691 = vor.u32 %v1687, %v1690
      %v1692 = vrot.slane %v1691, 4
      %v1694 = vshll.u32 %v1307, 16
      %v1696 = vrot.slane %v1694, 5
      %v1697 = vsel %vm1585, %v1692, %v1696
      %s1698 = scalar_lea.vmem %s4, 128
      %v1699 = vld [vmem:[%s1698] sm:$0xf]
      %v1700 = vld [vmem:[%s1698 + $0x4] sm:$0xf]
      %v1701 = vld [vmem:[%s1698 + $0x8] sm:$0xf]
      %v1702 = vld [vmem:[%s1698 + $0xc] sm:$0xf]
      %v1703 = vld [vmem:[%s1698 + $0x10] sm:$0xf]
      %v1704 = vld [vmem:[%s1698 + $0x14] sm:$0xf]
      %v1705 = vld [vmem:[%s1698 + $0x18] sm:$0xf]
      %v1706 = vld [vmem:[%s1698 + $0x1c] sm:$0xf]
      %v1707 = vld [vmem:[%s1698 + $0x20] sm:$0xf]
      %v1708 = vld [vmem:[%s1698 + $0x24] sm:$0xf]
      %v1709 = vld [vmem:[%s1698 + $0x28] sm:$0xf]
      %v1710 = vld [vmem:[%s1698 + $0x2c] sm:$0xf]
      %v1711 = vld [vmem:[%s1698 + $0x30] sm:$0xf]
      %v1712 = vld [vmem:[%s1698 + $0x34] sm:$0xf]
      %v1713 = vld [vmem:[%s1698 + $0x38] sm:$0xf]
      %v1714 = vld [vmem:[%s1698 + $0x3c] sm:$0xf]
      %v1715 = vunpack.c.l.b16 %v1599
      %v1716 = vunpack.c.l.b16 %v1613
      %v1717 = vunpack.c.l.b16 %v1627
      %v1718 = vunpack.c.l.b16 %v1641
      %v1719 = vunpack.c.l.b16 %v1655
      %v1720 = vunpack.c.l.b16 %v1669
      %v1721 = vunpack.c.l.b16 %v1683
      %v1722 = vunpack.c.l.b16 %v1697
      %v1723 = vpack.c.b16 %v1716, %v1715
      %v1724 = vpack.c.b16 %v1718, %v1717
      %v1725 = vpack.c.b16 %v1720, %v1719
      %v1726 = vpack.c.b16 %v1722, %v1721
      %v1747 = vunpack.c.l.b16 %v1699
      %v1748 = vunpack.c.l.b16 %v1700
      %v1749 = vunpack.c.l.b16 %v1701
      %v1750 = vunpack.c.l.b16 %v1702
      %v1751 = vunpack.c.l.b16 %v1703
      %v1752 = vunpack.c.l.b16 %v1704
      %v1753 = vunpack.c.l.b16 %v1705
      %v1754 = vunpack.c.l.b16 %v1706
      %v1755 = vunpack.c.l.b16 %v1707
      %v1756 = vunpack.c.l.b16 %v1708
      %v1757 = vunpack.c.l.b16 %v1709
      %v1758 = vunpack.c.l.b16 %v1710
      %v1759 = vunpack.c.l.b16 %v1711
      %v1760 = vunpack.c.l.b16 %v1712
      %v1761 = vunpack.c.l.b16 %v1713
      %v1762 = vunpack.c.l.b16 %v1714
      %v1763 = vpack.c.b16 %v1748, %v1747
      %v1764 = vpack.c.b16 %v1750, %v1749
      %v1765 = vpack.c.b16 %v1752, %v1751
      %v1766 = vpack.c.b16 %v1754, %v1753
      %v1767 = vpack.c.b16 %v1756, %v1755
      %v1768 = vpack.c.b16 %v1758, %v1757
      %v1769 = vpack.c.b16 %v1760, %v1759
      %v1770 = vpack.c.b16 %v1762, %v1761
      %1779 = vmatpush.bf16.msra.mxu0 %v1770
      %1780 = vmatpush.bf16.msra.mxu0 %v1769
      %1781 = vmatpush.bf16.msra.mxu0 %v1768
      %1782 = vmatpush.bf16.msra.mxu0 %v1767
      %1783 = vmatpush.bf16.msra.mxu0 %v1766
      %1784 = vmatpush.bf16.msra.mxu0 %v1765
      %1785 = vmatpush.bf16.msra.mxu0 %v1764
      %1786 = vmatpush.bf16.msra.mxu0 %v1763
      %1787 = vmatmul.bf16.gmra.mxu0 %v1723
      %v1788 = vpop.f32.mrf.mxu0
      %v1789 = vadd.f32 0.0, %v1788
      %v1790 = vpop.f32.mrf.mxu0
      %v1791 = vadd.f32 0.0, %v1790
      %1792 = vmatmul.bf16.gmra.mxu0 %v1724
      %v1793 = vpop.f32.mrf.mxu0
      %v1794 = vadd.f32 0.0, %v1793
      %v1795 = vpop.f32.mrf.mxu0
      %v1796 = vadd.f32 0.0, %v1795
      %1797 = vmatmul.bf16.gmra.mxu0 %v1725
      %v1798 = vpop.f32.mrf.mxu0
      %v1799 = vadd.f32 0.0, %v1798
      %v1800 = vpop.f32.mrf.mxu0
      %v1801 = vadd.f32 0.0, %v1800
      %1802 = vmatmul.bf16.gmra.mxu0 %v1726
      %v1803 = vpop.f32.mrf.mxu0
      %v1804 = vadd.f32 0.0, %v1803
      %v1805 = vpop.f32.mrf.mxu0
      %v1806 = vadd.f32 0.0, %v1805
      %1807 = vdwg.mxu0
      %v1808 = vadd.f32 %v1564, %v1789
      %v1809 = vadd.f32 %v1566, %v1791
      %v1810 = vadd.f32 %v1569, %v1794
      %v1811 = vadd.f32 %v1571, %v1796
      %v1812 = vadd.f32 %v1574, %v1799
      %v1813 = vadd.f32 %v1576, %v1801
      %v1814 = vadd.f32 %v1579, %v1804
      %v1815 = vadd.f32 %v1581, %v1806
      %s1816 = scalar_lea.vmem %s4, 192
      %v1817 = vld [vmem:[%s1816] sm:$0xf]
      %v1818 = vld [vmem:[%s1816 + $0x4] sm:$0xf]
      %v1819 = vld [vmem:[%s1816 + $0x8] sm:$0xf]
      %v1820 = vld [vmem:[%s1816 + $0xc] sm:$0xf]
      %v1821 = vld [vmem:[%s1816 + $0x10] sm:$0xf]
      %v1822 = vld [vmem:[%s1816 + $0x14] sm:$0xf]
      %v1823 = vld [vmem:[%s1816 + $0x18] sm:$0xf]
      %v1824 = vld [vmem:[%s1816 + $0x1c] sm:$0xf]
      %v1825 = vld [vmem:[%s1816 + $0x20] sm:$0xf]
      %v1826 = vld [vmem:[%s1816 + $0x24] sm:$0xf]
      %v1827 = vld [vmem:[%s1816 + $0x28] sm:$0xf]
      %v1828 = vld [vmem:[%s1816 + $0x2c] sm:$0xf]
      %v1829 = vld [vmem:[%s1816 + $0x30] sm:$0xf]
      %v1830 = vld [vmem:[%s1816 + $0x34] sm:$0xf]
      %v1831 = vld [vmem:[%s1816 + $0x38] sm:$0xf]
      %v1832 = vld [vmem:[%s1816 + $0x3c] sm:$0xf]
      %v1841 = vunpack.c.l.b16 %v1319
      %v1842 = vunpack.c.l.b16 %v1321
      %v1843 = vunpack.c.l.b16 %v1323
      %v1844 = vunpack.c.l.b16 %v1325
      %v1845 = vunpack.c.l.b16 %v1327
      %v1846 = vunpack.c.l.b16 %v1329
      %v1847 = vunpack.c.l.b16 %v1331
      %v1848 = vunpack.c.l.b16 %v1333
      %v1849 = vpack.c.b16 %v1842, %v1841
      %v1850 = vpack.c.b16 %v1844, %v1843
      %v1851 = vpack.c.b16 %v1846, %v1845
      %v1852 = vpack.c.b16 %v1848, %v1847
      %v1873 = vunpack.c.l.b16 %v1817
      %v1874 = vunpack.c.l.b16 %v1818
      %v1875 = vunpack.c.l.b16 %v1819
      %v1876 = vunpack.c.l.b16 %v1820
      %v1877 = vunpack.c.l.b16 %v1821
      %v1878 = vunpack.c.l.b16 %v1822
      %v1879 = vunpack.c.l.b16 %v1823
      %v1880 = vunpack.c.l.b16 %v1824
      %v1881 = vunpack.c.l.b16 %v1825
      %v1882 = vunpack.c.l.b16 %v1826
      %v1883 = vunpack.c.l.b16 %v1827
      %v1884 = vunpack.c.l.b16 %v1828
      %v1885 = vunpack.c.l.b16 %v1829
      %v1886 = vunpack.c.l.b16 %v1830
      %v1887 = vunpack.c.l.b16 %v1831
      %v1888 = vunpack.c.l.b16 %v1832
      %v1889 = vpack.c.b16 %v1874, %v1873
      %v1890 = vpack.c.b16 %v1876, %v1875
      %v1891 = vpack.c.b16 %v1878, %v1877
      %v1892 = vpack.c.b16 %v1880, %v1879
      %v1893 = vpack.c.b16 %v1882, %v1881
      %v1894 = vpack.c.b16 %v1884, %v1883
      %v1895 = vpack.c.b16 %v1886, %v1885
      %v1896 = vpack.c.b16 %v1888, %v1887
      %1905 = vmatpush.bf16.msra.mxu0 %v1896
      %1906 = vmatpush.bf16.msra.mxu0 %v1895
      %1907 = vmatpush.bf16.msra.mxu0 %v1894
      %1908 = vmatpush.bf16.msra.mxu0 %v1893
      %1909 = vmatpush.bf16.msra.mxu0 %v1892
      %1910 = vmatpush.bf16.msra.mxu0 %v1891
      %1911 = vmatpush.bf16.msra.mxu0 %v1890
      %1912 = vmatpush.bf16.msra.mxu0 %v1889
      %1913 = vmatmul.bf16.gmra.mxu0 %v1849
      %v1914 = vpop.f32.mrf.mxu0
      %v1915 = vadd.f32 0.0, %v1914
      %v1916 = vpop.f32.mrf.mxu0
      %v1917 = vadd.f32 0.0, %v1916
      %1918 = vmatmul.bf16.gmra.mxu0 %v1850
      %v1919 = vpop.f32.mrf.mxu0
      %v1920 = vadd.f32 0.0, %v1919
      %v1921 = vpop.f32.mrf.mxu0
      %v1922 = vadd.f32 0.0, %v1921
      %1923 = vmatmul.bf16.gmra.mxu0 %v1851
      %v1924 = vpop.f32.mrf.mxu0
      %v1925 = vadd.f32 0.0, %v1924
      %v1926 = vpop.f32.mrf.mxu0
      %v1927 = vadd.f32 0.0, %v1926
      %1928 = vmatmul.bf16.gmra.mxu0 %v1852
      %v1929 = vpop.f32.mrf.mxu0
      %v1930 = vadd.f32 0.0, %v1929
      %v1931 = vpop.f32.mrf.mxu0
      %v1932 = vadd.f32 0.0, %v1931
      %1933 = vdwg.mxu0
      %v1934 = vadd.f32 %v1808, %v1915
      %v1935 = vadd.f32 %v1809, %v1917
      %v1936 = vadd.f32 %v1810, %v1920
      %v1937 = vadd.f32 %v1811, %v1922
      %v1938 = vadd.f32 %v1812, %v1925
      %v1939 = vadd.f32 %v1813, %v1927
      %v1940 = vadd.f32 %v1814, %v1930
      %v1941 = vadd.f32 %v1815, %v1932
      %s1942 = scalar_lea.vmem %s4, 256
      %v1943 = vld [vmem:[%s1942] sm:$0xf]
      %v1944 = vld [vmem:[%s1942 + $0x4] sm:$0xf]
      %v1945 = vld [vmem:[%s1942 + $0x8] sm:$0xf]
      %v1946 = vld [vmem:[%s1942 + $0xc] sm:$0xf]
      %v1947 = vld [vmem:[%s1942 + $0x10] sm:$0xf]
      %v1948 = vld [vmem:[%s1942 + $0x14] sm:$0xf]
      %v1949 = vld [vmem:[%s1942 + $0x18] sm:$0xf]
      %v1950 = vld [vmem:[%s1942 + $0x1c] sm:$0xf]
      %v1951 = vld [vmem:[%s1942 + $0x20] sm:$0xf]
      %v1952 = vld [vmem:[%s1942 + $0x24] sm:$0xf]
      %v1953 = vld [vmem:[%s1942 + $0x28] sm:$0xf]
      %v1954 = vld [vmem:[%s1942 + $0x2c] sm:$0xf]
      %v1955 = vld [vmem:[%s1942 + $0x30] sm:$0xf]
      %v1956 = vld [vmem:[%s1942 + $0x34] sm:$0xf]
      %v1957 = vld [vmem:[%s1942 + $0x38] sm:$0xf]
      %v1958 = vld [vmem:[%s1942 + $0x3c] sm:$0xf]
      %v1967 = vunpack.c.l.b16 %v1335
      %v1968 = vunpack.c.l.b16 %v1336
      %v1969 = vunpack.c.l.b16 %v1337
      %v1970 = vunpack.c.l.b16 %v1338
      %v1971 = vunpack.c.l.b16 %v1339
      %v1972 = vunpack.c.l.b16 %v1340
      %v1973 = vunpack.c.l.b16 %v1341
      %v1974 = vunpack.c.l.b16 %v1342
      %v1975 = vpack.c.b16 %v1968, %v1967
      %v1976 = vpack.c.b16 %v1970, %v1969
      %v1977 = vpack.c.b16 %v1972, %v1971
      %v1978 = vpack.c.b16 %v1974, %v1973
      %v1999 = vunpack.c.l.b16 %v1943
      %v2000 = vunpack.c.l.b16 %v1944
      %v2001 = vunpack.c.l.b16 %v1945
      %v2002 = vunpack.c.l.b16 %v1946
      %v2003 = vunpack.c.l.b16 %v1947
      %v2004 = vunpack.c.l.b16 %v1948
      %v2005 = vunpack.c.l.b16 %v1949
      %v2006 = vunpack.c.l.b16 %v1950
      %v2007 = vunpack.c.l.b16 %v1951
      %v2008 = vunpack.c.l.b16 %v1952
      %v2009 = vunpack.c.l.b16 %v1953
      %v2010 = vunpack.c.l.b16 %v1954
      %v2011 = vunpack.c.l.b16 %v1955
      %v2012 = vunpack.c.l.b16 %v1956
      %v2013 = vunpack.c.l.b16 %v1957
      %v2014 = vunpack.c.l.b16 %v1958
      %v2015 = vpack.c.b16 %v2000, %v1999
      %v2016 = vpack.c.b16 %v2002, %v2001
      %v2017 = vpack.c.b16 %v2004, %v2003
      %v2018 = vpack.c.b16 %v2006, %v2005
      %v2019 = vpack.c.b16 %v2008, %v2007
      %v2020 = vpack.c.b16 %v2010, %v2009
      %v2021 = vpack.c.b16 %v2012, %v2011
      %v2022 = vpack.c.b16 %v2014, %v2013
      %2031 = vmatpush.bf16.msra.mxu0 %v2022
      %2032 = vmatpush.bf16.msra.mxu0 %v2021
      %2033 = vmatpush.bf16.msra.mxu0 %v2020
      %2034 = vmatpush.bf16.msra.mxu0 %v2019
      %2035 = vmatpush.bf16.msra.mxu0 %v2018
      %2036 = vmatpush.bf16.msra.mxu0 %v2017
      %2037 = vmatpush.bf16.msra.mxu0 %v2016
      %2038 = vmatpush.bf16.msra.mxu0 %v2015
      %2039 = vmatmul.bf16.gmra.mxu0 %v1975
      %v2040 = vpop.f32.mrf.mxu0
      %v2041 = vadd.f32 0.0, %v2040
      %v2042 = vpop.f32.mrf.mxu0
      %v2043 = vadd.f32 0.0, %v2042
      %2044 = vmatmul.bf16.gmra.mxu0 %v1976
      %v2045 = vpop.f32.mrf.mxu0
      %v2046 = vadd.f32 0.0, %v2045
      %v2047 = vpop.f32.mrf.mxu0
      %v2048 = vadd.f32 0.0, %v2047
      %2049 = vmatmul.bf16.gmra.mxu0 %v1977
      %v2050 = vpop.f32.mrf.mxu0
      %v2051 = vadd.f32 0.0, %v2050
      %v2052 = vpop.f32.mrf.mxu0
      %v2053 = vadd.f32 0.0, %v2052
      %2054 = vmatmul.bf16.gmra.mxu0 %v1978
      %v2055 = vpop.f32.mrf.mxu0
      %v2056 = vadd.f32 0.0, %v2055
      %v2057 = vpop.f32.mrf.mxu0
      %v2058 = vadd.f32 0.0, %v2057
      %2059 = vdwg.mxu0
      %v2060 = vadd.f32 %v1934, %v2041
      %v2061 = vadd.f32 %v1935, %v2043
      %v2062 = vadd.f32 %v1936, %v2046
      %v2063 = vadd.f32 %v1937, %v2048
      %v2064 = vadd.f32 %v1938, %v2051
      %v2065 = vadd.f32 %v1939, %v2053
      %v2066 = vadd.f32 %v1940, %v2056
      %v2067 = vadd.f32 %v1941, %v2058
      %v2069 = vshrl.u32 %v1319, 16
      %v2071 = vrot.slane %v2069, 4
      %v2072 = vshll.u32 %v1319, 16
      %v2074 = vrot.slane %v2072, 5
      %v2075 = vor.u32 %v2071, %v2074
      %v2076 = vrot.slane %v2075, 4
      %v2078 = vshll.u32 %v1320, 16
      %v2080 = vrot.slane %v2078, 5
      %v2081 = vsel %vm1585, %v2076, %v2080
      %v2083 = vshrl.u32 %v1321, 16
      %v2085 = vrot.slane %v2083, 4
      %v2086 = vshll.u32 %v1321, 16
      %v2088 = vrot.slane %v2086, 5
      %v2089 = vor.u32 %v2085, %v2088
      %v2090 = vrot.slane %v2089, 4
      %v2092 = vshll.u32 %v1322, 16
      %v2094 = vrot.slane %v2092, 5
      %v2095 = vsel %vm1585, %v2090, %v2094
      %v2097 = vshrl.u32 %v1323, 16
      %v2099 = vrot.slane %v2097, 4
      %v2100 = vshll.u32 %v1323, 16
      %v2102 = vrot.slane %v2100, 5
      %v2103 = vor.u32 %v2099, %v2102
      %v2104 = vrot.slane %v2103, 4
      %v2106 = vshll.u32 %v1324, 16
      %v2108 = vrot.slane %v2106, 5
      %v2109 = vsel %vm1585, %v2104, %v2108
      %v2111 = vshrl.u32 %v1325, 16
      %v2113 = vrot.slane %v2111, 4
      %v2114 = vshll.u32 %v1325, 16
      %v2116 = vrot.slane %v2114, 5
      %v2117 = vor.u32 %v2113, %v2116
      %v2118 = vrot.slane %v2117, 4
      %v2120 = vshll.u32 %v1326, 16
      %v2122 = vrot.slane %v2120, 5
      %v2123 = vsel %vm1585, %v2118, %v2122
      %v2125 = vshrl.u32 %v1327, 16
      %v2127 = vrot.slane %v2125, 4
      %v2128 = vshll.u32 %v1327, 16
      %v2130 = vrot.slane %v2128, 5
      %v2131 = vor.u32 %v2127, %v2130
      %v2132 = vrot.slane %v2131, 4
      %v2134 = vshll.u32 %v1328, 16
      %v2136 = vrot.slane %v2134, 5
      %v2137 = vsel %vm1585, %v2132, %v2136
      %v2139 = vshrl.u32 %v1329, 16
      %v2141 = vrot.slane %v2139, 4
      %v2142 = vshll.u32 %v1329, 16
      %v2144 = vrot.slane %v2142, 5
      %v2145 = vor.u32 %v2141, %v2144
      %v2146 = vrot.slane %v2145, 4
      %v2148 = vshll.u32 %v1330, 16
      %v2150 = vrot.slane %v2148, 5
      %v2151 = vsel %vm1585, %v2146, %v2150
      %v2153 = vshrl.u32 %v1331, 16
      %v2155 = vrot.slane %v2153, 4
      %v2156 = vshll.u32 %v1331, 16
      %v2158 = vrot.slane %v2156, 5
      %v2159 = vor.u32 %v2155, %v2158
      %v2160 = vrot.slane %v2159, 4
      %v2162 = vshll.u32 %v1332, 16
      %v2164 = vrot.slane %v2162, 5
      %v2165 = vsel %vm1585, %v2160, %v2164
      %v2167 = vshrl.u32 %v1333, 16
      %v2169 = vrot.slane %v2167, 4
      %v2170 = vshll.u32 %v1333, 16
      %v2172 = vrot.slane %v2170, 5
      %v2173 = vor.u32 %v2169, %v2172
      %v2174 = vrot.slane %v2173, 4
      %v2176 = vshll.u32 %v1334, 16
      %v2178 = vrot.slane %v2176, 5
      %v2179 = vsel %vm1585, %v2174, %v2178
      %s2180 = scalar_lea.vmem %s4, 320
      %v2181 = vld [vmem:[%s2180] sm:$0xf]
      %v2182 = vld [vmem:[%s2180 + $0x4] sm:$0xf]
      %v2183 = vld [vmem:[%s2180 + $0x8] sm:$0xf]
      %v2184 = vld [vmem:[%s2180 + $0xc] sm:$0xf]
      %v2185 = vld [vmem:[%s2180 + $0x10] sm:$0xf]
      %v2186 = vld [vmem:[%s2180 + $0x14] sm:$0xf]
      %v2187 = vld [vmem:[%s2180 + $0x18] sm:$0xf]
      %v2188 = vld [vmem:[%s2180 + $0x1c] sm:$0xf]
      %v2189 = vld [vmem:[%s2180 + $0x20] sm:$0xf]
      %v2190 = vld [vmem:[%s2180 + $0x24] sm:$0xf]
      %v2191 = vld [vmem:[%s2180 + $0x28] sm:$0xf]
      %v2192 = vld [vmem:[%s2180 + $0x2c] sm:$0xf]
      %v2193 = vld [vmem:[%s2180 + $0x30] sm:$0xf]
      %v2194 = vld [vmem:[%s2180 + $0x34] sm:$0xf]
      %v2195 = vld [vmem:[%s2180 + $0x38] sm:$0xf]
      %v2196 = vld [vmem:[%s2180 + $0x3c] sm:$0xf]
      %v2197 = vunpack.c.l.b16 %v2081
      %v2198 = vunpack.c.l.b16 %v2095
      %v2199 = vunpack.c.l.b16 %v2109
      %v2200 = vunpack.c.l.b16 %v2123
      %v2201 = vunpack.c.l.b16 %v2137
      %v2202 = vunpack.c.l.b16 %v2151
      %v2203 = vunpack.c.l.b16 %v2165
      %v2204 = vunpack.c.l.b16 %v2179
      %v2205 = vpack.c.b16 %v2198, %v2197
      %v2206 = vpack.c.b16 %v2200, %v2199
      %v2207 = vpack.c.b16 %v2202, %v2201
      %v2208 = vpack.c.b16 %v2204, %v2203
      %v2229 = vunpack.c.l.b16 %v2181
      %v2230 = vunpack.c.l.b16 %v2182
      %v2231 = vunpack.c.l.b16 %v2183
      %v2232 = vunpack.c.l.b16 %v2184
      %v2233 = vunpack.c.l.b16 %v2185
      %v2234 = vunpack.c.l.b16 %v2186
      %v2235 = vunpack.c.l.b16 %v2187
      %v2236 = vunpack.c.l.b16 %v2188
      %v2237 = vunpack.c.l.b16 %v2189
      %v2238 = vunpack.c.l.b16 %v2190
      %v2239 = vunpack.c.l.b16 %v2191
      %v2240 = vunpack.c.l.b16 %v2192
      %v2241 = vunpack.c.l.b16 %v2193
      %v2242 = vunpack.c.l.b16 %v2194
      %v2243 = vunpack.c.l.b16 %v2195
      %v2244 = vunpack.c.l.b16 %v2196
      %v2245 = vpack.c.b16 %v2230, %v2229
      %v2246 = vpack.c.b16 %v2232, %v2231
      %v2247 = vpack.c.b16 %v2234, %v2233
      %v2248 = vpack.c.b16 %v2236, %v2235
      %v2249 = vpack.c.b16 %v2238, %v2237
      %v2250 = vpack.c.b16 %v2240, %v2239
      %v2251 = vpack.c.b16 %v2242, %v2241
      %v2252 = vpack.c.b16 %v2244, %v2243
      %2261 = vmatpush.bf16.msra.mxu0 %v2252
      %2262 = vmatpush.bf16.msra.mxu0 %v2251
      %2263 = vmatpush.bf16.msra.mxu0 %v2250
      %2264 = vmatpush.bf16.msra.mxu0 %v2249
      %2265 = vmatpush.bf16.msra.mxu0 %v2248
      %2266 = vmatpush.bf16.msra.mxu0 %v2247
      %2267 = vmatpush.bf16.msra.mxu0 %v2246
      %2268 = vmatpush.bf16.msra.mxu0 %v2245
      %2269 = vmatmul.bf16.gmra.mxu0 %v2205
      %v2270 = vpop.f32.mrf.mxu0
      %v2271 = vadd.f32 0.0, %v2270
      %v2272 = vpop.f32.mrf.mxu0
      %v2273 = vadd.f32 0.0, %v2272
      %2274 = vmatmul.bf16.gmra.mxu0 %v2206
      %v2275 = vpop.f32.mrf.mxu0
      %v2276 = vadd.f32 0.0, %v2275
      %v2277 = vpop.f32.mrf.mxu0
      %v2278 = vadd.f32 0.0, %v2277
      %2279 = vmatmul.bf16.gmra.mxu0 %v2207
      %v2280 = vpop.f32.mrf.mxu0
      %v2281 = vadd.f32 0.0, %v2280
      %v2282 = vpop.f32.mrf.mxu0
      %v2283 = vadd.f32 0.0, %v2282
      %2284 = vmatmul.bf16.gmra.mxu0 %v2208
      %v2285 = vpop.f32.mrf.mxu0
      %v2286 = vadd.f32 0.0, %v2285
      %v2287 = vpop.f32.mrf.mxu0
      %v2288 = vadd.f32 0.0, %v2287
      %2289 = vdwg.mxu0
      %v2290 = vadd.f32 %v2060, %v2271
      %v2291 = vadd.f32 %v2061, %v2273
      %v2292 = vadd.f32 %v2062, %v2276
      %v2293 = vadd.f32 %v2063, %v2278
      %v2294 = vadd.f32 %v2064, %v2281
      %v2295 = vadd.f32 %v2065, %v2283
      %v2296 = vadd.f32 %v2066, %v2286
      %v2297 = vadd.f32 %v2067, %v2288
      %s2298 = scalar_lea.vmem %s4, 384
      %v2299 = vld [vmem:[%s2298] sm:$0xf]
      %v2300 = vld [vmem:[%s2298 + $0x4] sm:$0xf]
      %v2301 = vld [vmem:[%s2298 + $0x8] sm:$0xf]
      %v2302 = vld [vmem:[%s2298 + $0xc] sm:$0xf]
      %v2303 = vld [vmem:[%s2298 + $0x10] sm:$0xf]
      %v2304 = vld [vmem:[%s2298 + $0x14] sm:$0xf]
      %v2305 = vld [vmem:[%s2298 + $0x18] sm:$0xf]
      %v2306 = vld [vmem:[%s2298 + $0x1c] sm:$0xf]
      %v2307 = vld [vmem:[%s2298 + $0x20] sm:$0xf]
      %v2308 = vld [vmem:[%s2298 + $0x24] sm:$0xf]
      %v2309 = vld [vmem:[%s2298 + $0x28] sm:$0xf]
      %v2310 = vld [vmem:[%s2298 + $0x2c] sm:$0xf]
      %v2311 = vld [vmem:[%s2298 + $0x30] sm:$0xf]
      %v2312 = vld [vmem:[%s2298 + $0x34] sm:$0xf]
      %v2313 = vld [vmem:[%s2298 + $0x38] sm:$0xf]
      %v2314 = vld [vmem:[%s2298 + $0x3c] sm:$0xf]
      %v2316 = vunpack.c.l.b16 %v1308
      %v2317 = vpack.c.b16 %v1492, %v1491
      %v2318 = vpack.c.b16 %v1494, %v1493
      %v2319 = vpack.c.b16 %v1496, %v1495
      %v2320 = vpack.c.b16 %v2316, %v1497
      %v2341 = vunpack.c.l.b16 %v2299
      %v2342 = vunpack.c.l.b16 %v2300
      %v2343 = vunpack.c.l.b16 %v2301
      %v2344 = vunpack.c.l.b16 %v2302
      %v2345 = vunpack.c.l.b16 %v2303
      %v2346 = vunpack.c.l.b16 %v2304
      %v2347 = vunpack.c.l.b16 %v2305
      %v2348 = vunpack.c.l.b16 %v2306
      %v2349 = vunpack.c.l.b16 %v2307
      %v2350 = vunpack.c.l.b16 %v2308
      %v2351 = vunpack.c.l.b16 %v2309
      %v2352 = vunpack.c.l.b16 %v2310
      %v2353 = vunpack.c.l.b16 %v2311
      %v2354 = vunpack.c.l.b16 %v2312
      %v2355 = vunpack.c.l.b16 %v2313
      %v2356 = vunpack.c.l.b16 %v2314
      %v2357 = vpack.c.b16 %v2342, %v2341
      %v2358 = vpack.c.b16 %v2344, %v2343
      %v2359 = vpack.c.b16 %v2346, %v2345
      %v2360 = vpack.c.b16 %v2348, %v2347
      %v2361 = vpack.c.b16 %v2350, %v2349
      %v2362 = vpack.c.b16 %v2352, %v2351
      %v2363 = vpack.c.b16 %v2354, %v2353
      %v2364 = vpack.c.b16 %v2356, %v2355
      %2373 = vmatpush.bf16.msra.mxu0 %v2364
      %2374 = vmatpush.bf16.msra.mxu0 %v2363
      %2375 = vmatpush.bf16.msra.mxu0 %v2362
      %2376 = vmatpush.bf16.msra.mxu0 %v2361
      %2377 = vmatpush.bf16.msra.mxu0 %v2360
      %2378 = vmatpush.bf16.msra.mxu0 %v2359
      %2379 = vmatpush.bf16.msra.mxu0 %v2358
      %2380 = vmatpush.bf16.msra.mxu0 %v2357
      %2381 = vmatmul.bf16.gmra.mxu0 %v2317
      %v2382 = vpop.f32.mrf.mxu0
      %v2383 = vadd.f32 0.0, %v2382
      %v2384 = vpop.f32.mrf.mxu0
      %v2385 = vadd.f32 0.0, %v2384
      %2386 = vmatmul.bf16.gmra.mxu0 %v2318
      %v2387 = vpop.f32.mrf.mxu0
      %v2388 = vadd.f32 0.0, %v2387
      %v2389 = vpop.f32.mrf.mxu0
      %v2390 = vadd.f32 0.0, %v2389
      %2391 = vmatmul.bf16.gmra.mxu0 %v2319
      %v2392 = vpop.f32.mrf.mxu0
      %v2393 = vadd.f32 0.0, %v2392
      %v2394 = vpop.f32.mrf.mxu0
      %v2395 = vadd.f32 0.0, %v2394
      %2396 = vmatmul.bf16.gmra.mxu0 %v2320
      %v2397 = vpop.f32.mrf.mxu0
      %v2398 = vadd.f32 0.0, %v2397
      %v2399 = vpop.f32.mrf.mxu0
      %v2400 = vadd.f32 0.0, %v2399
      %2401 = vdwg.mxu0
      %v2402 = vadd.f32 %v2290, %v2383
      %v2403 = vadd.f32 %v2291, %v2385
      %v2404 = vadd.f32 %v2292, %v2388
      %v2405 = vadd.f32 %v2293, %v2390
      %v2406 = vadd.f32 %v2294, %v2393
      %v2407 = vadd.f32 %v2295, %v2395
      %v2408 = vadd.f32 %v2296, %v2398
      %v2409 = vadd.f32 %v2297, %v2400
      %s2410 = scalar_lea.vmem %s4, 448
      %v2411 = vld [vmem:[%s2410] sm:$0xf]
      %v2412 = vld [vmem:[%s2410 + $0x4] sm:$0xf]
      %v2413 = vld [vmem:[%s2410 + $0x8] sm:$0xf]
      %v2414 = vld [vmem:[%s2410 + $0xc] sm:$0xf]
      %v2415 = vld [vmem:[%s2410 + $0x10] sm:$0xf]
      %v2416 = vld [vmem:[%s2410 + $0x14] sm:$0xf]
      %v2417 = vld [vmem:[%s2410 + $0x18] sm:$0xf]
      %v2418 = vld [vmem:[%s2410 + $0x1c] sm:$0xf]
      %v2419 = vld [vmem:[%s2410 + $0x20] sm:$0xf]
      %v2420 = vld [vmem:[%s2410 + $0x24] sm:$0xf]
      %v2421 = vld [vmem:[%s2410 + $0x28] sm:$0xf]
      %v2422 = vld [vmem:[%s2410 + $0x2c] sm:$0xf]
      %v2423 = vld [vmem:[%s2410 + $0x30] sm:$0xf]
      %v2424 = vld [vmem:[%s2410 + $0x34] sm:$0xf]
      %v2425 = vld [vmem:[%s2410 + $0x38] sm:$0xf]
      %v2426 = vld [vmem:[%s2410 + $0x3c] sm:$0xf]
      %v2428 = vunpack.c.l.b16 %v1318
      %v2429 = vpack.c.b16 %v1391, %v1390
      %v2430 = vpack.c.b16 %v1393, %v1392
      %v2431 = vpack.c.b16 %v1395, %v1394
      %v2432 = vpack.c.b16 %v2428, %v1396
      %v2453 = vunpack.c.l.b16 %v2411
      %v2454 = vunpack.c.l.b16 %v2412
      %v2455 = vunpack.c.l.b16 %v2413
      %v2456 = vunpack.c.l.b16 %v2414
      %v2457 = vunpack.c.l.b16 %v2415
      %v2458 = vunpack.c.l.b16 %v2416
      %v2459 = vunpack.c.l.b16 %v2417
      %v2460 = vunpack.c.l.b16 %v2418
      %v2461 = vunpack.c.l.b16 %v2419
      %v2462 = vunpack.c.l.b16 %v2420
      %v2463 = vunpack.c.l.b16 %v2421
      %v2464 = vunpack.c.l.b16 %v2422
      %v2465 = vunpack.c.l.b16 %v2423
      %v2466 = vunpack.c.l.b16 %v2424
      %v2467 = vunpack.c.l.b16 %v2425
      %v2468 = vunpack.c.l.b16 %v2426
      %v2469 = vpack.c.b16 %v2454, %v2453
      %v2470 = vpack.c.b16 %v2456, %v2455
      %v2471 = vpack.c.b16 %v2458, %v2457
      %v2472 = vpack.c.b16 %v2460, %v2459
      %v2473 = vpack.c.b16 %v2462, %v2461
      %v2474 = vpack.c.b16 %v2464, %v2463
      %v2475 = vpack.c.b16 %v2466, %v2465
      %v2476 = vpack.c.b16 %v2468, %v2467
      %2485 = vmatpush.bf16.msra.mxu0 %v2476
      %2486 = vmatpush.bf16.msra.mxu0 %v2475
      %2487 = vmatpush.bf16.msra.mxu0 %v2474
      %2488 = vmatpush.bf16.msra.mxu0 %v2473
      %2489 = vmatpush.bf16.msra.mxu0 %v2472
      %2490 = vmatpush.bf16.msra.mxu0 %v2471
      %2491 = vmatpush.bf16.msra.mxu0 %v2470
      %2492 = vmatpush.bf16.msra.mxu0 %v2469
      %2493 = vmatmul.bf16.gmra.mxu0 %v2429
      %v2494 = vpop.f32.mrf.mxu0
      %v2495 = vadd.f32 0.0, %v2494
      %v2496 = vpop.f32.mrf.mxu0
      %v2497 = vadd.f32 0.0, %v2496
      %2498 = vmatmul.bf16.gmra.mxu0 %v2430
      %v2499 = vpop.f32.mrf.mxu0
      %v2500 = vadd.f32 0.0, %v2499
      %v2501 = vpop.f32.mrf.mxu0
      %v2502 = vadd.f32 0.0, %v2501
      %2503 = vmatmul.bf16.gmra.mxu0 %v2431
      %v2504 = vpop.f32.mrf.mxu0
      %v2505 = vadd.f32 0.0, %v2504
      %v2506 = vpop.f32.mrf.mxu0
      %v2507 = vadd.f32 0.0, %v2506
      %2508 = vmatmul.bf16.gmra.mxu0 %v2432
      %v2509 = vpop.f32.mrf.mxu0
      %v2510 = vadd.f32 0.0, %v2509
      %v2511 = vpop.f32.mrf.mxu0
      %v2512 = vadd.f32 0.0, %v2511
      %2513 = vdwg.mxu0
      %v2514 = vadd.f32 %v2402, %v2495
      %v2515 = vadd.f32 %v2403, %v2497
      %v2516 = vadd.f32 %v2404, %v2500
      %v2517 = vadd.f32 %v2405, %v2502
      %v2518 = vadd.f32 %v2406, %v2505
      %v2519 = vadd.f32 %v2407, %v2507
      %v2520 = vadd.f32 %v2408, %v2510
      %v2521 = vadd.f32 %v2409, %v2512
      %v2523 = vshrl.u32 %v1308, 16
      %v2525 = vrot.slane %v2523, 4
      %v2526 = vshll.u32 %v1308, 16
      %v2528 = vrot.slane %v2526, 5
      %v2529 = vor.u32 %v2525, %v2528
      %v2530 = vrot.slane %v2529, 4
      %v2532 = vshll.u32 %v1309, 16
      %v2534 = vrot.slane %v2532, 5
      %v2535 = vsel %vm1585, %v2530, %v2534
      %s2536 = scalar_lea.vmem %s4, 512
      %v2537 = vld [vmem:[%s2536] sm:$0xf]
      %v2538 = vld [vmem:[%s2536 + $0x4] sm:$0xf]
      %v2539 = vld [vmem:[%s2536 + $0x8] sm:$0xf]
      %v2540 = vld [vmem:[%s2536 + $0xc] sm:$0xf]
      %v2541 = vld [vmem:[%s2536 + $0x10] sm:$0xf]
      %v2542 = vld [vmem:[%s2536 + $0x14] sm:$0xf]
      %v2543 = vld [vmem:[%s2536 + $0x18] sm:$0xf]
      %v2544 = vld [vmem:[%s2536 + $0x1c] sm:$0xf]
      %v2545 = vld [vmem:[%s2536 + $0x20] sm:$0xf]
      %v2546 = vld [vmem:[%s2536 + $0x24] sm:$0xf]
      %v2547 = vld [vmem:[%s2536 + $0x28] sm:$0xf]
      %v2548 = vld [vmem:[%s2536 + $0x2c] sm:$0xf]
      %v2549 = vld [vmem:[%s2536 + $0x30] sm:$0xf]
      %v2550 = vld [vmem:[%s2536 + $0x34] sm:$0xf]
      %v2551 = vld [vmem:[%s2536 + $0x38] sm:$0xf]
      %v2552 = vld [vmem:[%s2536 + $0x3c] sm:$0xf]
      %v2553 = vunpack.c.l.b16 %v2535
      %v2554 = vpack.c.b16 %v1717, %v1716
      %v2555 = vpack.c.b16 %v1719, %v1718
      %v2556 = vpack.c.b16 %v1721, %v1720
      %v2557 = vpack.c.b16 %v2553, %v1722
      %v2578 = vunpack.c.l.b16 %v2537
      %v2579 = vunpack.c.l.b16 %v2538
      %v2580 = vunpack.c.l.b16 %v2539
      %v2581 = vunpack.c.l.b16 %v2540
      %v2582 = vunpack.c.l.b16 %v2541
      %v2583 = vunpack.c.l.b16 %v2542
      %v2584 = vunpack.c.l.b16 %v2543
      %v2585 = vunpack.c.l.b16 %v2544
      %v2586 = vunpack.c.l.b16 %v2545
      %v2587 = vunpack.c.l.b16 %v2546
      %v2588 = vunpack.c.l.b16 %v2547
      %v2589 = vunpack.c.l.b16 %v2548
      %v2590 = vunpack.c.l.b16 %v2549
      %v2591 = vunpack.c.l.b16 %v2550
      %v2592 = vunpack.c.l.b16 %v2551
      %v2593 = vunpack.c.l.b16 %v2552
      %v2594 = vpack.c.b16 %v2579, %v2578
      %v2595 = vpack.c.b16 %v2581, %v2580
      %v2596 = vpack.c.b16 %v2583, %v2582
      %v2597 = vpack.c.b16 %v2585, %v2584
      %v2598 = vpack.c.b16 %v2587, %v2586
      %v2599 = vpack.c.b16 %v2589, %v2588
      %v2600 = vpack.c.b16 %v2591, %v2590
      %v2601 = vpack.c.b16 %v2593, %v2592
      %2610 = vmatpush.bf16.msra.mxu0 %v2601
      %2611 = vmatpush.bf16.msra.mxu0 %v2600
      %2612 = vmatpush.bf16.msra.mxu0 %v2599
      %2613 = vmatpush.bf16.msra.mxu0 %v2598
      %2614 = vmatpush.bf16.msra.mxu0 %v2597
      %2615 = vmatpush.bf16.msra.mxu0 %v2596
      %2616 = vmatpush.bf16.msra.mxu0 %v2595
      %2617 = vmatpush.bf16.msra.mxu0 %v2594
      %2618 = vmatmul.bf16.gmra.mxu0 %v2554
      %v2619 = vpop.f32.mrf.mxu0
      %v2620 = vadd.f32 0.0, %v2619
      %v2621 = vpop.f32.mrf.mxu0
      %v2622 = vadd.f32 0.0, %v2621
      %2623 = vmatmul.bf16.gmra.mxu0 %v2555
      %v2624 = vpop.f32.mrf.mxu0
      %v2625 = vadd.f32 0.0, %v2624
      %v2626 = vpop.f32.mrf.mxu0
      %v2627 = vadd.f32 0.0, %v2626
      %2628 = vmatmul.bf16.gmra.mxu0 %v2556
      %v2629 = vpop.f32.mrf.mxu0
      %v2630 = vadd.f32 0.0, %v2629
      %v2631 = vpop.f32.mrf.mxu0
      %v2632 = vadd.f32 0.0, %v2631
      %2633 = vmatmul.bf16.gmra.mxu0 %v2557
      %v2634 = vpop.f32.mrf.mxu0
      %v2635 = vadd.f32 0.0, %v2634
      %v2636 = vpop.f32.mrf.mxu0
      %v2637 = vadd.f32 0.0, %v2636
      %2638 = vdwg.mxu0
      %v2639 = vadd.f32 %v2514, %v2620
      %v2640 = vadd.f32 %v2515, %v2622
      %v2641 = vadd.f32 %v2516, %v2625
      %v2642 = vadd.f32 %v2517, %v2627
      %v2643 = vadd.f32 %v2518, %v2630
      %v2644 = vadd.f32 %v2519, %v2632
      %v2645 = vadd.f32 %v2520, %v2635
      %v2646 = vadd.f32 %v2521, %v2637
      %v2647 = vld [vmem:[%s5] sm:$0x1]
      %v2649 = vperm.slane %v2647, 0
      %v2651 = vadd.f32 %v2639, %v2649
      %v2652 = vadd.f32 %v2640, %v2649
      %v2653 = vadd.f32 %v2641, %v2649
      %v2654 = vadd.f32 %v2642, %v2649
      %v2655 = vadd.f32 %v2643, %v2649
      %v2656 = vadd.f32 %v2644, %v2649
      %v2657 = vadd.f32 %v2645, %v2649
      %v2658 = vadd.f32 %v2646, %v2649
      %v2659 = vmax.f32 %v2651, 0.0
      %v2660 = vmax.f32 %v2652, 0.0
      %v2661 = vmax.f32 %v2653, 0.0
      %v2662 = vmax.f32 %v2654, 0.0
      %v2663 = vmax.f32 %v2655, 0.0
      %v2664 = vmax.f32 %v2656, 0.0
      %v2665 = vmax.f32 %v2657, 0.0
      %v2666 = vmax.f32 %v2658, 0.0
      %v2667 = vpack.c.bf16 %v2660, %v2659
      %v2668 = vpack.c.bf16 %v2662, %v2661
      %v2669 = vpack.c.bf16 %v2664, %v2663
      %v2670 = vpack.c.bf16 %v2666, %v2665
      %v2671 = vld [vmem:[%s6] sm:$0xf]
      %v2672 = vld [vmem:[%s6 + $0x4] sm:$0xf]
      %v2673 = vld [vmem:[%s6 + $0x8] sm:$0xf]
      %v2674 = vld [vmem:[%s6 + $0xc] sm:$0xf]
      %v2675 = vld [vmem:[%s6 + $0x10] sm:$0xf]
      %v2676 = vld [vmem:[%s6 + $0x14] sm:$0xf]
      %v2677 = vld [vmem:[%s6 + $0x18] sm:$0xf]
      %v2678 = vld [vmem:[%s6 + $0x1c] sm:$0xf]
      %v2679 = vld [vmem:[%s6 + $0x20] sm:$0xf]
      %v2680 = vld [vmem:[%s6 + $0x24] sm:$0xf]
      %v2681 = vld [vmem:[%s6 + $0x28] sm:$0xf]
      %v2682 = vld [vmem:[%s6 + $0x2c] sm:$0xf]
      %v2683 = vld [vmem:[%s6 + $0x30] sm:$0xf]
      %v2684 = vld [vmem:[%s6 + $0x34] sm:$0xf]
      %v2685 = vld [vmem:[%s6 + $0x38] sm:$0xf]
      %v2686 = vld [vmem:[%s6 + $0x3c] sm:$0xf]
      %v2703 = vunpack.c.l.b16 %v2671
      %v2704 = vunpack.c.l.b16 %v2672
      %v2705 = vunpack.c.l.b16 %v2673
      %v2706 = vunpack.c.l.b16 %v2674
      %v2707 = vunpack.c.l.b16 %v2675
      %v2708 = vunpack.c.l.b16 %v2676
      %v2709 = vunpack.c.l.b16 %v2677
      %v2710 = vunpack.c.l.b16 %v2678
      %v2711 = vunpack.c.l.b16 %v2679
      %v2712 = vunpack.c.l.b16 %v2680
      %v2713 = vunpack.c.l.b16 %v2681
      %v2714 = vunpack.c.l.b16 %v2682
      %v2715 = vunpack.c.l.b16 %v2683
      %v2716 = vunpack.c.l.b16 %v2684
      %v2717 = vunpack.c.l.b16 %v2685
      %v2718 = vunpack.c.l.b16 %v2686
      %v2719 = vpack.c.b16 %v2704, %v2703
      %v2720 = vpack.c.b16 %v2706, %v2705
      %v2721 = vpack.c.b16 %v2708, %v2707
      %v2722 = vpack.c.b16 %v2710, %v2709
      %v2723 = vpack.c.b16 %v2712, %v2711
      %v2724 = vpack.c.b16 %v2714, %v2713
      %v2725 = vpack.c.b16 %v2716, %v2715
      %v2726 = vpack.c.b16 %v2718, %v2717
      %2735 = vmatpush.bf16.msra.mxu0 %v2726
      %2736 = vmatpush.bf16.msra.mxu0 %v2725
      %2737 = vmatpush.bf16.msra.mxu0 %v2724
      %2738 = vmatpush.bf16.msra.mxu0 %v2723
      %2739 = vmatpush.bf16.msra.mxu0 %v2722
      %2740 = vmatpush.bf16.msra.mxu0 %v2721
      %2741 = vmatpush.bf16.msra.mxu0 %v2720
      %2742 = vmatpush.bf16.msra.mxu0 %v2719
      %2743 = vmatmul.bf16.gmra.mxu0 %v2667
      %v2744 = vpop.f32.mrf.mxu0
      %v2745 = vadd.f32 0.0, %v2744
      %v2746 = vpop.f32.mrf.mxu0
      %v2747 = vadd.f32 0.0, %v2746
      %2748 = vmatmul.bf16.gmra.mxu0 %v2668
      %v2749 = vpop.f32.mrf.mxu0
      %v2750 = vadd.f32 0.0, %v2749
      %v2751 = vpop.f32.mrf.mxu0
      %v2752 = vadd.f32 0.0, %v2751
      %2753 = vmatmul.bf16.gmra.mxu0 %v2669
      %v2754 = vpop.f32.mrf.mxu0
      %v2755 = vadd.f32 0.0, %v2754
      %v2756 = vpop.f32.mrf.mxu0
      %v2757 = vadd.f32 0.0, %v2756
      %2758 = vmatmul.bf16.gmra.mxu0 %v2670
      %v2759 = vpop.f32.mrf.mxu0
      %v2760 = vadd.f32 0.0, %v2759
      %v2761 = vpop.f32.mrf.mxu0
      %v2762 = vadd.f32 0.0, %v2761
      %2763 = vdwg.mxu0
      %v2764 = vadd.f32 %v1347, %v2745
      %v2765 = vadd.f32 %v1347, %v2747
      %v2766 = vadd.f32 %v1347, %v2750
      %v2767 = vadd.f32 %v1347, %v2752
      %v2768 = vadd.f32 %v1347, %v2755
      %v2769 = vadd.f32 %v1347, %v2757
      %v2770 = vadd.f32 %v1347, %v2760
      %v2771 = vadd.f32 %v1347, %v2762
      %v2772 = vld [vmem:[%s8] sm:$0xf]
      %v2773 = vld [vmem:[%s8 + $0x4] sm:$0xf]
      %v2774 = vld [vmem:[%s8 + $0x8] sm:$0xf]
      %v2775 = vld [vmem:[%s8 + $0xc] sm:$0xf]
      %v2776 = vld [vmem:[%s8 + $0x10] sm:$0xf]
      %v2777 = vld [vmem:[%s8 + $0x14] sm:$0xf]
      %v2778 = vld [vmem:[%s8 + $0x18] sm:$0xf]
      %v2779 = vld [vmem:[%s8 + $0x1c] sm:$0xf]
      %v2780 = vld [vmem:[%s8 + $0x20] sm:$0xf]
      %v2781 = vld [vmem:[%s8 + $0x24] sm:$0xf]
      %v2782 = vld [vmem:[%s8 + $0x28] sm:$0xf]
      %v2783 = vld [vmem:[%s8 + $0x2c] sm:$0xf]
      %v2784 = vld [vmem:[%s8 + $0x30] sm:$0xf]
      %v2785 = vld [vmem:[%s8 + $0x34] sm:$0xf]
      %v2786 = vld [vmem:[%s8 + $0x38] sm:$0xf]
      %v2787 = vld [vmem:[%s8 + $0x3c] sm:$0xf]
      %v2788 = vld [vmem:[%s9] sm:$0x1]
      %v2790 = vperm.slane %v2788, 0
      %v2792 = vpack.c.b16 %v580, %v578
      %v2793 = vpack.c.b16 %v584, %v582
      %v2794 = vpack.c.b16 %v588, %v586
      %v2795 = vpack.c.b16 %v592, %v590
      %v2816 = vunpack.c.l.b16 %v2772
      %v2817 = vunpack.c.l.b16 %v2773
      %v2818 = vunpack.c.l.b16 %v2774
      %v2819 = vunpack.c.l.b16 %v2775
      %v2820 = vunpack.c.l.b16 %v2776
      %v2821 = vunpack.c.l.b16 %v2777
      %v2822 = vunpack.c.l.b16 %v2778
      %v2823 = vunpack.c.l.b16 %v2779
      %v2824 = vunpack.c.l.b16 %v2780
      %v2825 = vunpack.c.l.b16 %v2781
      %v2826 = vunpack.c.l.b16 %v2782
      %v2827 = vunpack.c.l.b16 %v2783
      %v2828 = vunpack.c.l.b16 %v2784
      %v2829 = vunpack.c.l.b16 %v2785
      %v2830 = vunpack.c.l.b16 %v2786
      %v2831 = vunpack.c.l.b16 %v2787
      %v2832 = vpack.c.b16 %v2817, %v2816
      %v2833 = vpack.c.b16 %v2819, %v2818
      %v2834 = vpack.c.b16 %v2821, %v2820
      %v2835 = vpack.c.b16 %v2823, %v2822
      %v2836 = vpack.c.b16 %v2825, %v2824
      %v2837 = vpack.c.b16 %v2827, %v2826
      %v2838 = vpack.c.b16 %v2829, %v2828
      %v2839 = vpack.c.b16 %v2831, %v2830
      %2848 = vmatpush.bf16.msra.mxu0 %v2839
      %2849 = vmatpush.bf16.msra.mxu0 %v2838
      %2850 = vmatpush.bf16.msra.mxu0 %v2837
      %2851 = vmatpush.bf16.msra.mxu0 %v2836
      %2852 = vmatpush.bf16.msra.mxu0 %v2835
      %2853 = vmatpush.bf16.msra.mxu0 %v2834
      %2854 = vmatpush.bf16.msra.mxu0 %v2833
      %2855 = vmatpush.bf16.msra.mxu0 %v2832
      %2856 = vmatmul.bf16.gmra.mxu0 %v2792
      %v2857 = vpop.f32.mrf.mxu0
      %v2858 = vadd.f32 %v2790, %v2857
      %v2859 = vpop.f32.mrf.mxu0
      %v2860 = vadd.f32 %v2790, %v2859
      %2861 = vmatmul.bf16.gmra.mxu0 %v2793
      %v2862 = vpop.f32.mrf.mxu0
      %v2863 = vadd.f32 %v2790, %v2862
      %v2864 = vpop.f32.mrf.mxu0
      %v2865 = vadd.f32 %v2790, %v2864
      %2866 = vmatmul.bf16.gmra.mxu0 %v2794
      %v2867 = vpop.f32.mrf.mxu0
      %v2868 = vadd.f32 %v2790, %v2867
      %v2869 = vpop.f32.mrf.mxu0
      %v2870 = vadd.f32 %v2790, %v2869
      %2871 = vmatmul.bf16.gmra.mxu0 %v2795
      %v2872 = vpop.f32.mrf.mxu0
      %v2873 = vadd.f32 %v2790, %v2872
      %v2874 = vpop.f32.mrf.mxu0
      %v2875 = vadd.f32 %v2790, %v2874
      %2876 = vdwg.mxu0
      %v2877 = vadd.f32 %v2764, %v2858
      %v2878 = vadd.f32 %v2765, %v2860
      %v2879 = vadd.f32 %v2766, %v2863
      %v2880 = vadd.f32 %v2767, %v2865
      %v2881 = vadd.f32 %v2768, %v2868
      %v2882 = vadd.f32 %v2769, %v2870
      %v2883 = vadd.f32 %v2770, %v2873
      %v2884 = vadd.f32 %v2771, %v2875
      %v2885 = vmax.f32 %v2877, 0.0
      %v2886 = vmax.f32 %v2878, 0.0
      %v2887 = vmax.f32 %v2879, 0.0
      %v2888 = vmax.f32 %v2880, 0.0
      %v2889 = vmax.f32 %v2881, 0.0
      %v2890 = vmax.f32 %v2882, 0.0
      %v2891 = vmax.f32 %v2883, 0.0
      %v2892 = vmax.f32 %v2884, 0.0
      %v2893 = vpack.c.bf16 %v2885, %v2885
      %v2894 = vpack.c.bf16 %v2886, %v2886
      %v2895 = vpack.c.bf16 %v2887, %v2887
      %v2896 = vpack.c.bf16 %v2888, %v2888
      %v2897 = vpack.c.bf16 %v2889, %v2889
      %v2898 = vpack.c.bf16 %v2890, %v2890
      %v2899 = vpack.c.bf16 %v2891, %v2891
      %v2900 = vpack.c.bf16 %v2892, %v2892
      %2901 = vst [vmem:[%s359] sm:$0xf] %v2893
      %2902 = vst [vmem:[%s359 + $0x4] sm:$0xf] %v2894
      %2903 = vst [vmem:[%s359 + $0x8] sm:$0xf] %v2895
      %2904 = vst [vmem:[%s359 + $0xc] sm:$0xf] %v2896
      %2905 = vst [vmem:[%s359 + $0x10] sm:$0xf] %v2897
      %2906 = vst [vmem:[%s359 + $0x14] sm:$0xf] %v2898
      %2907 = vst [vmem:[%s359 + $0x18] sm:$0xf] %v2899
      %2908 = vst [vmem:[%s359 + $0x1c] sm:$0xf] %v2900
      %p2909 = scmp.lt.s32.totalorder %s21, 1
      %s2910 = scalar_select %p2909, %s21, 1
      %s2911 = smul.addr %s2910, 8
      %s2912 = smul.addr %s2911, 4
      %s2913 = scalar_lea.vmem %s10, %s2912
      // Predicated region
      $region61: #{bottleneck_resnext.1} parent=59 // pred_check
        %p2914 = pneg %p254
      $region62: #{bottleneck_resnext.1} parent=59 // pred_check_branch
        %2916 = sbr.rel (%p2914) target = $region64
      $region63: #{bottleneck_resnext.1} parent=59 // pred_region
        _
      $region64: #{bottleneck_resnext.1} parent=59 // pred_fallthru
        _
    $region60: #{bottleneck_resnext.1} parent=5 // pred_fallthru
      _
    %p2917 = scmp.le.s32.totalorder 2, %s16
    // Predicated region
    $region65: #{bottleneck_resnext.1} parent=5 // pred_check
      %p2918 = pneg %p2917
    $region66: #{bottleneck_resnext.1} parent=5 // pred_check_branch
      %2920 = sbr.rel (%p2918) target = $region68
    $region67: #{bottleneck_resnext.1} parent=5 // pred_region
      %s2921 = ssub.s32 %s16, 2
      // Predicated region
      $region69: #{bottleneck_resnext.1} parent=67 // pred_check
        %p2922 = pneg %p260
      $region70: #{bottleneck_resnext.1} parent=67 // pred_check_branch
        %2924 = sbr.rel (%p2922) target = $region72
      $region71: #{bottleneck_resnext.1} parent=67 // pred_region
        %p2925 = scmp.lt.s32.totalorder %s22, 1
        %s2926 = scalar_select %p2925, %s22, 1
        %s2927 = smul.addr %s2926, 8
        %s2928 = smul.addr %s2927, 4
        %s2929 = scalar_lea.vmem %s10, %s2928
      $region72: #{bottleneck_resnext.1} parent=67 // pred_fallthru
        _
    $region68: #{bottleneck_resnext.1} parent=5 // pred_fallthru
      _
  $region6: #{bottleneck_resnext.1} parent=0 // loop_footer
    %s20 = sadd.s32 1, %s16
  $region7: #{bottleneck_resnext.1} parent=0 // loop_footer_branch
    %15 = sbr.rel target = $region3
  $region8: #{bottleneck_resnext.1} parent=0 // loop_exit
    _

</llo_original>
